<compile_context>
chip_gen: v6e
topology: v6e:2x2x1
jax: 0.10.0
libtpu: 0.0.40
codegen_flags: <defaults>
</compile_context>

<pallas_src>
import functools

import jax
import jax.numpy as jnp
from jax.experimental import pallas as pl
from jax.experimental.pallas import tpu as pltpu


def _with_residual_ffn_kernel(x_ref, w1_ref, b1_ref, w2_ref, b2_ref, o_ref,
                              xn_ref, acc_ref):
    """One (row-tile, H-tile) grid step of
         o = x + GELU(LNc(x) @ W1' + b1') @ W2 + b2
    where LNc is centre/scale only (gamma/beta already folded into W1'/b1').

    Grid = (row tiles, H tiles).  The H axis is a streamed reduction: a bf16
    LN(x) tile and an f32 accumulator live in VMEM scratch, so weight VMEM
    residency is independent of H.  MXU operands are bf16 with f32
    accumulation; LN stats, bias adds, GELU and the residual stay f32.
    """
    hi = pl.program_id(1)

    @pl.when(hi == 0)
    def _():
        x = x_ref[...].astype(jnp.float32)                     # (tm, D)
        mean = jnp.mean(x, axis=-1, keepdims=True)
        cent = x - mean
        var = jnp.mean(cent * cent, axis=-1, keepdims=True)
        # LayerNorm affine folded into W1'/b1' -> centre & scale only here.
        xn_ref[...] = (cent * jax.lax.rsqrt(var + 1e-5)).astype(jnp.bfloat16)
        acc_ref[...] = jnp.zeros_like(acc_ref)

    # Linear(D, tH): bf16 MXU operands, f32 accumulate.
    h = jnp.dot(xn_ref[...], w1_ref[...], preferred_element_type=jnp.float32)
    # tanh-GELU: transcendental goes to the EUP slot (free vs. VPU erf poly).
    h = jax.nn.gelu(h + b1_ref[...], approximate=True)
    # Linear(tH, D) partial product, accumulated over the H axis.
    acc_ref[...] += jnp.dot(h.astype(jnp.bfloat16), w2_ref[...],
                            preferred_element_type=jnp.float32)

    @pl.when(hi == pl.num_programs(1) - 1)
    def _():
        x = x_ref[...].astype(jnp.float32)
        # Residual add = the WithResidual part, fused with the final bias.
        o_ref[...] = (x + acc_ref[...] + b2_ref[...]).astype(o_ref.dtype)


def prepare_ffn_params(gamma, beta, w1, b1, w2, b2):
    """One-time parameter preparation (keep OUT of the per-call path):
      * fold the LayerNorm affine into the first linear:
          W1' = gamma[:, None] * W1,   b1' = b1 + beta @ W1
      * cast MXU-side weights to bf16 once (no per-call HBM cast pass).
    """
    w1p = (gamma[:, None] * w1).astype(jnp.bfloat16)
    b1p = (b1 + beta @ w1).astype(jnp.float32).reshape(1, -1)
    w2p = w2.astype(jnp.bfloat16)
    b2p = b2.astype(jnp.float32).reshape(1, -1)
    return w1p, b1p, w2p, b2p


def _pick_tm(M, tm_max=256, min_steps=8):
    """Largest row tile that is a multiple of 8, divides M (avoids pad+slice
    HBM copies) and still yields >= min_steps grid steps so both v7x cores
    get several pipelined steps.  Falls back to padding only if unavoidable."""
    tm_max = max(8, min(tm_max, M))
    divs = [t for t in range(8, tm_max + 1, 8) if M % t == 0]
    if not divs:
        return min(tm_max, ((M + 7) // 8) * 8), True
    good = [t for t in divs if M // t >= min_steps]
    return (max(good) if good else max(divs)), False


def _pick_th(D, H, budget_bytes=16 * 2 ** 20):
    """H tile for streaming W1/W2: keeps per-step (double-buffered) bf16
    weight tiles under budget so large FFNs fit v7x's 64 MiB VMEM.  Prefers
    multiples of 256 (full-width MXU contraction/output on v6e/v7x)."""
    def tile_bytes(t):
        return 2 * 2 * (D * t) * 2        # (w1 tile + w2 tile) x 2 buffers, bf16
    if tile_bytes(H) <= budget_bytes:
        return H
    for step in (256, 128):
        cands = [t for t in range(step, H, step)
                 if H % t == 0 and tile_bytes(t) <= budget_bytes]
        if cands:
            return max(cands)
    return H                               # no clean divisor: keep whole H


def with_residual_ffn(x, w1p, b1p, w2p, b2p, *, tm_max=256, th=None):
    """x: (B, T, D).  Returns x + Linear2(GELU(Linear1(LayerNorm(x)))), with
    the LN affine pre-folded into (w1p, b1p) by prepare_ffn_params."""
    B, T, D = x.shape
    H = w1p.shape[1]
    M = B * T

    tm, needs_pad = _pick_tm(M, tm_max=tm_max)
    n_rows = pl.cdiv(M, tm)
    Mp = n_rows * tm

    th = _pick_th(D, H) if th is None else int(th)
    assert H % th == 0, "H tile must divide H"
    n_h = H // th

    x2 = x.reshape(M, D)
    if needs_pad:
        # Zero rows are LN-safe (var + eps > 0) and sliced off afterwards.
        x2 = jnp.pad(x2, ((0, Mp - M), (0, 0)))

    # --- VMEM budget, capped per generation (not a fixed 64 MiB). ---
    f32b, bf16b = 4, 2
    wbuf = 1 if n_h == 1 else 2            # weights single-buffered if constant
    vmem_est = (
        2 * tm * D * f32b                  # x tile (double-buffered)
        + 2 * tm * D * f32b                # out tile (double-buffered)
        + wbuf * 2 * D * th * bf16b        # W1' / W2 tiles
        + wbuf * th * f32b + D * f32b      # b1' tile / b2
        + tm * D * (bf16b + f32b)          # LN cache + f32 accumulator scratch
        + 2 * tm * th * f32b               # in-kernel h intermediate (rough)
    )
    try:
        vmem_cap = int(pltpu.get_tpu_info().vmem_capacity_bytes) * 3 // 4
    except Exception:                      # conservative fallback (v7x-safe)
        vmem_cap = 48 * 2 ** 20
    vmem_limit = int(min(max(int(vmem_est * 1.5), 32 * 2 ** 20), vmem_cap))

    weight_passes = n_rows if n_h > 1 else 1
    cost = pl.CostEstimate(
        flops=4 * Mp * D * H,                               # two matmuls
        transcendentals=Mp * H,                             # tanh in GELU
        bytes_accessed=2 * Mp * D * f32b
        + weight_passes * 2 * D * H * bf16b + (H + D) * f32b,
    )

    const = dict(pipeline_mode=pl.Buffered(1))   # single-buffer constant blocks
    w_mode = const if n_h == 1 else {}           # weights constant only if 1 H-tile

    grid_spec = pl.GridSpec(
        grid=(n_rows, n_h),
        in_specs=[
            pl.BlockSpec((tm, D), lambda i, h: (i, 0)),              # x rows
            pl.BlockSpec((D, th), lambda i, h: (0, h), **w_mode),    # W1' (bf16)
            pl.BlockSpec((1, th), lambda i, h: (0, h), **w_mode),    # b1'
            pl.BlockSpec((th, D), lambda i, h: (h, 0), **w_mode),    # W2 (bf16)
            pl.BlockSpec((1, D), lambda i, h: (0, 0), **const),      # b2
        ],
        out_specs=pl.BlockSpec((tm, D), lambda i, h: (i, 0)),
        scratch_shapes=[
            pltpu.VMEM((tm, D), jnp.bfloat16),   # cached LN(x) tile (MXU lhs)
            pltpu.VMEM((tm, D), jnp.float32),    # f32 accumulator
        ],
    )

    out = pl.pallas_call(
        _with_residual_ffn_kernel,
        out_shape=jax.ShapeDtypeStruct((Mp, D), x.dtype),
        grid_spec=grid_spec,
        compiler_params=pltpu.CompilerParams(
            dimension_semantics=("parallel", "arbitrary"),
            vmem_limit_bytes=vmem_limit),
        cost_estimate=cost,
    )(x2, w1p, b1p, w2p, b2p)

    if needs_pad:
        out = out[:M]
    return out.reshape(B, T, D)


class BracketedSequence:
    def __init__(self, x, first=None, nb=None):
        self.x = x
        self.first = 0 if first is None else first
        self.nb = x.shape[1] if nb is None else nb

    def slice(self):
        return self.x[:, self.first:self.first + self.nb]

    def complete(self):
        return self.first == 0 and self.nb == self.x.shape[1]


class WithResidual:
    """bs -> BracketedSequence(bs.x + f(bs).x, bs.first, bs.nb).

    When f is the LN-FFN block above, the residual add is already fused
    inside the Pallas kernel (f returns x + ffn(x)); first/nb pass through.
    """

    def __init__(self, f):
        self.f = f

    def __call__(self, bs):
        fb = self.f(bs)
        return BracketedSequence(fb.x, bs.first, bs.nb)


def reference_forward(x, gamma, beta, w1, b1, w2, b2):
    """Pure-JAX f32 reference of x + Linear2(GELU(Linear1(LayerNorm(x))))
    with torch-default exact-erf GELU."""
    mean = jnp.mean(x, axis=-1, keepdims=True)
    var = jnp.mean((x - mean) ** 2, axis=-1, keepdims=True)
    xn = (x - mean) * jax.lax.rsqrt(var + 1e-5) * gamma + beta
    h = jax.nn.gelu(xn @ w1 + b1, approximate=False)
    return x + (h @ w2 + b2)


if __name__ == "__main__":
    key = jax.random.PRNGKey(0)
    # Small demo shapes, but lane-dense and 256-multiples so K/N fill the
    # full 256-wide MXU on v6e/v7x.  M = B*T = 512 -> tm=64 -> 8 row tiles
    # (4 pipelined steps per v7x TensorCore).
    B, T, D, H = 2, 256, 256, 512

    keys = jax.random.split(key, 7)
    x = jax.random.normal(keys[0], (B, T, D), jnp.float32)
    # Deterministic synthetic parameters (LayerNorm(D), Linear(D,H), Linear(H,D)).
    gamma = 1.0 + 0.1 * jax.random.normal(keys[1], (D,), jnp.float32)
    beta = 0.1 * jax.random.normal(keys[2], (D,), jnp.float32)
    w1 = jax.random.normal(keys[3], (D, H), jnp.float32) * (1.0 / D ** 0.5)
    b1 = jax.random.normal(keys[4], (H,), jnp.float32) * 0.01
    w2 = jax.random.normal(keys[5], (H, D), jnp.float32) * (1.0 / H ** 0.5)
    b2 = jax.random.normal(keys[6], (D,), jnp.float32) * 0.01

    # One-time weight prep (bf16 cast + LN-affine fold) - NOT per call.
    w1p, b1p, w2p, b2p = prepare_ffn_params(gamma, beta, w1, b1, w2, b2)
    ffn_residual = functools.partial(
        with_residual_ffn, w1p=w1p, b1p=b1p, w2p=w2p, b2p=b2p)

    block = WithResidual(lambda bs: BracketedSequence(
        ffn_residual(bs.x), bs.first, bs.nb))

    bs_in = BracketedSequence(x)             # complete bracket: first=0, nb=T
    bs_out = block(bs_in)
    out = jax.block_until_ready(bs_out.x)

    ref = reference_forward(x, gamma, beta, w1, b1, w2, b2)
    assert out.shape == (B, T, D)
    assert bs_out.first == 0 and bs_out.nb == T
    # bf16 MXU operands + folded-gamma bf16 weights + tanh GELU (f32
    # accumulate / f32 LN + residual) -> ~1e-2-level deviation vs. pure f32.
    err = float(jnp.max(jnp.abs(out - ref)))
    assert jnp.allclose(out, ref, atol=5e-2, rtol=5e-2), err

    # Also exercise the H-streamed accumulator path (th < H), as used for
    # production FFN sizes on v7x's 64 MiB VMEM.
    out2 = jax.block_until_ready(
        with_residual_ffn(x, w1p, b1p, w2p, b2p, th=128))
    err2 = float(jnp.max(jnp.abs(out2 - ref)))
    assert jnp.allclose(out2, ref, atol=5e-2, rtol=5e-2), err2

    print("KERNEL_OK")
</pallas_src>

<mosaic_0001>
module attributes {stable_mosaic.version = 11 : i64} {
  func.func @_with_residual_ffn_kernel(%arg0: i32, %arg1: i32, %arg2: memref<64x256xf32, #tpu.memory_space<vmem>>, %arg3: memref<256x512xbf16, #tpu.memory_space<vmem>>, %arg4: memref<1x512xf32, #tpu.memory_space<vmem>>, %arg5: memref<512x256xbf16, #tpu.memory_space<vmem>>, %arg6: memref<1x256xf32, #tpu.memory_space<vmem>>, %arg7: memref<64x256xf32, #tpu.memory_space<vmem>>, %arg8: memref<64x256xbf16, #tpu.memory_space<vmem>>, %arg9: memref<64x256xf32, #tpu.memory_space<vmem>>) attributes {dimension_semantics = [#tpu.dimension_semantics<parallel>, #tpu.dimension_semantics<arbitrary>], iteration_bounds = array<i64: 8, 1>, scalar_prefetch = 0 : i64, scratch_operands = 2 : i64, tpu.core_type = #tpu.core_type<tc>, window_params = [{transform_indices = @transform_0, window_bounds = array<i64: 64, 256>}, {pipeline_mode = #tpu.pipeline_mode<synchronous>, transform_indices = @transform_1, window_bounds = array<i64: 256, 512>}, {pipeline_mode = #tpu.pipeline_mode<synchronous>, transform_indices = @transform_2, window_bounds = array<i64: 1, 512>}, {pipeline_mode = #tpu.pipeline_mode<synchronous>, transform_indices = @transform_3, window_bounds = array<i64: 512, 256>}, {pipeline_mode = #tpu.pipeline_mode<synchronous>, transform_indices = @transform_4, window_bounds = array<i64: 1, 256>}, {transform_indices = @transform_5, window_bounds = array<i64: 64, 256>}]} {
    %c0_i32 = arith.constant 0 : i32
    %0 = arith.cmpi eq, %arg1, %c0_i32 : i32
    %1 = arith.extui %0 : i1 to i32
    %c0_i32_0 = arith.constant 0 : i32
    %2 = arith.cmpi ne, %1, %c0_i32_0 : i32
    scf.if %2 {
      %c0_19 = arith.constant 0 : index
      %c0_20 = arith.constant 0 : index
      %31 = vector.load %arg2[%c0_19, %c0_20] : memref<64x256xf32, #tpu.memory_space<vmem>>, vector<64x256xf32>
      %cst_21 = arith.constant dense<0.000000e+00> : vector<64xf32>
      %32 = vector.multi_reduction <add>, %31, %cst_21 [1] : vector<64x256xf32> to vector<64xf32>
      %33 = vector.shape_cast %32 : vector<64xf32> to vector<64x1xf32>
      %cst_22 = arith.constant 2.560000e+02 : f32
      %34 = vector.broadcast %cst_22 : f32 to vector<64x1xf32>
      %35 = arith.divf %33, %34 : vector<64x1xf32>
      %36 = vector.broadcast %35 : vector<64x1xf32> to vector<64x256xf32>
      %37 = arith.subf %31, %36 : vector<64x256xf32>
      %38 = arith.mulf %37, %37 : vector<64x256xf32>
      %cst_23 = arith.constant dense<0.000000e+00> : vector<64xf32>
      %39 = vector.multi_reduction <add>, %38, %cst_23 [1] : vector<64x256xf32> to vector<64xf32>
      %40 = vector.shape_cast %39 : vector<64xf32> to vector<64x1xf32>
      %cst_24 = arith.constant 2.560000e+02 : f32
      %41 = vector.broadcast %cst_24 : f32 to vector<64x1xf32>
      %42 = arith.divf %40, %41 : vector<64x1xf32>
      %cst_25 = arith.constant 9.99999974E-6 : f32
      %43 = vector.broadcast %cst_25 : f32 to vector<64x1xf32>
      %44 = arith.addf %42, %43 : vector<64x1xf32>
      %45 = math.rsqrt %44 : vector<64x1xf32>
      %46 = vector.broadcast %45 : vector<64x1xf32> to vector<64x256xf32>
      %47 = arith.mulf %37, %46 : vector<64x256xf32>
      %48 = arith.truncf %47 : vector<64x256xf32> to vector<64x256xbf16>
      %c0_26 = arith.constant 0 : index
      %c0_27 = arith.constant 0 : index
      %49 = vector.load %arg8[%c0_26, %c0_27] : memref<64x256xbf16, #tpu.memory_space<vmem>>, vector<64x256xbf16>
      tpu.vector_store %arg8[%c0_26, %c0_27], %48 {strides = array<i32>} : memref<64x256xbf16, #tpu.memory_space<vmem>>, vector<64x256xbf16>,
      %cst_28 = arith.constant 0.000000e+00 : f32
      %50 = vector.broadcast %cst_28 : f32 to vector<64x256xf32>
      %c0_29 = arith.constant 0 : index
      %c0_30 = arith.constant 0 : index
      %51 = vector.load %arg9[%c0_29, %c0_30] : memref<64x256xf32, #tpu.memory_space<vmem>>, vector<64x256xf32>
      tpu.vector_store %arg9[%c0_29, %c0_30], %50 {strides = array<i32>} : memref<64x256xf32, #tpu.memory_space<vmem>>, vector<64x256xf32>,
    } else {
    }
    %c0 = arith.constant 0 : index
    %c0_1 = arith.constant 0 : index
    %3 = vector.load %arg8[%c0, %c0_1] : memref<64x256xbf16, #tpu.memory_space<vmem>>, vector<64x256xbf16>
    %c0_2 = arith.constant 0 : index
    %c0_3 = arith.constant 0 : index
    %4 = vector.load %arg3[%c0_2, %c0_3] : memref<256x512xbf16, #tpu.memory_space<vmem>>, vector<256x512xbf16>
    %cst = arith.constant dense<0.000000e+00> : vector<64x512xf32>
    %5 = tpu.matmul %3, %4, %cst {dimension_numbers = #tpu.dot_dimension_numbers<[1], [0], [0], [1], [0, 0, 1, 1], [], []>} : vector<64x256xbf16>, vector<256x512xbf16>, vector<64x512xf32> -> vector<64x512xf32>
    %c0_4 = arith.constant 0 : index
    %c0_5 = arith.constant 0 : index
    %6 = vector.load %arg4[%c0_4, %c0_5] : memref<1x512xf32, #tpu.memory_space<vmem>>, vector<1x512xf32>
    %7 = vector.broadcast %6 : vector<1x512xf32> to vector<64x512xf32>
    %8 = arith.addf %5, %7 : vector<64x512xf32>
    %9 = arith.mulf %8, %8 : vector<64x512xf32>
    %10 = arith.mulf %8, %9 : vector<64x512xf32>
    %cst_6 = arith.constant 4.471500e-02 : f32
    %11 = vector.broadcast %cst_6 : f32 to vector<64x512xf32>
    %12 = arith.mulf %11, %10 : vector<64x512xf32>
    %13 = arith.addf %8, %12 : vector<64x512xf32>
    %cst_7 = arith.constant 0.797884583 : f32
    %14 = vector.broadcast %cst_7 : f32 to vector<64x512xf32>
    %15 = arith.mulf %14, %13 : vector<64x512xf32>
    %16 = math.tanh %15 : vector<64x512xf32>
    %cst_8 = arith.constant 1.000000e+00 : f32
    %17 = vector.broadcast %cst_8 : f32 to vector<64x512xf32>
    %18 = arith.addf %17, %16 : vector<64x512xf32>
    %cst_9 = arith.constant 5.000000e-01 : f32
    %19 = vector.broadcast %cst_9 : f32 to vector<64x512xf32>
    %20 = arith.mulf %19, %18 : vector<64x512xf32>
    %21 = arith.mulf %8, %20 : vector<64x512xf32>
    %c0_10 = arith.constant 0 : index
    %c0_11 = arith.constant 0 : index
    %22 = vector.load %arg9[%c0_10, %c0_11] : memref<64x256xf32, #tpu.memory_space<vmem>>, vector<64x256xf32>
    %23 = arith.truncf %21 : vector<64x512xf32> to vector<64x512xbf16>
    %c0_12 = arith.constant 0 : index
    %c0_13 = arith.constant 0 : index
    %24 = vector.load %arg5[%c0_12, %c0_13] : memref<512x256xbf16, #tpu.memory_space<vmem>>, vector<512x256xbf16>
    %cst_14 = arith.constant dense<0.000000e+00> : vector<64x256xf32>
    %25 = tpu.matmul %23, %24, %cst_14 {dimension_numbers = #tpu.dot_dimension_numbers<[1], [0], [0], [1], [0, 0, 1, 1], [], []>} : vector<64x512xbf16>, vector<512x256xbf16>, vector<64x256xf32> -> vector<64x256xf32>
    %26 = arith.addf %22, %25 : vector<64x256xf32>
    %c0_15 = arith.constant 0 : index
    %c0_16 = arith.constant 0 : index
    %27 = vector.load %arg9[%c0_15, %c0_16] : memref<64x256xf32, #tpu.memory_space<vmem>>, vector<64x256xf32>
    tpu.vector_store %arg9[%c0_15, %c0_16], %26 {strides = array<i32>} : memref<64x256xf32, #tpu.memory_space<vmem>>, vector<64x256xf32>,
    %c0_i32_17 = arith.constant 0 : i32
    %28 = arith.cmpi eq, %arg1, %c0_i32_17 : i32
    %29 = arith.extui %28 : i1 to i32
    %c0_i32_18 = arith.constant 0 : i32
    %30 = arith.cmpi ne, %29, %c0_i32_18 : i32
    scf.if %30 {
      %c0_19 = arith.constant 0 : index
      %c0_20 = arith.constant 0 : index
      %31 = vector.load %arg2[%c0_19, %c0_20] : memref<64x256xf32, #tpu.memory_space<vmem>>, vector<64x256xf32>
      %c0_21 = arith.constant 0 : index
      %c0_22 = arith.constant 0 : index
      %32 = vector.load %arg9[%c0_21, %c0_22] : memref<64x256xf32, #tpu.memory_space<vmem>>, vector<64x256xf32>
      %33 = arith.addf %31, %32 : vector<64x256xf32>
      %c0_23 = arith.constant 0 : index
      %c0_24 = arith.constant 0 : index
      %34 = vector.load %arg6[%c0_23, %c0_24] : memref<1x256xf32, #tpu.memory_space<vmem>>, vector<1x256xf32>
      %35 = vector.broadcast %34 : vector<1x256xf32> to vector<64x256xf32>
      %36 = arith.addf %33, %35 : vector<64x256xf32>
      %c0_25 = arith.constant 0 : index
      %c0_26 = arith.constant 0 : index
      %37 = vector.load %arg7[%c0_25, %c0_26] : memref<64x256xf32, #tpu.memory_space<vmem>>, vector<64x256xf32>
      tpu.vector_store %arg7[%c0_25, %c0_26], %36 {strides = array<i32>} : memref<64x256xf32, #tpu.memory_space<vmem>>, vector<64x256xf32>,
    } else {
    }
    return
  }
  func.func @transform_0(%arg0: i32, %arg1: i32) -> (i32, i32) {
    %c0_i32 = arith.constant 0 : i32
    %c0_i32_0 = arith.constant 0 : i32
    return %arg0, %c0_i32 : i32, i32
  }
  func.func @transform_1(%arg0: i32, %arg1: i32) -> (i32, i32) {
    %c0_i32 = arith.constant 0 : i32
    %c0_i32_0 = arith.constant 0 : i32
    return %c0_i32, %arg1 : i32, i32
  }
  func.func @transform_2(%arg0: i32, %arg1: i32) -> (i32, i32) {
    %c0_i32 = arith.constant 0 : i32
    %c0_i32_0 = arith.constant 0 : i32
    return %c0_i32, %arg1 : i32, i32
  }
  func.func @transform_3(%arg0: i32, %arg1: i32) -> (i32, i32) {
    %c0_i32 = arith.constant 0 : i32
    %c0_i32_0 = arith.constant 0 : i32
    return %arg1, %c0_i32 : i32, i32
  }
  func.func @transform_4(%arg0: i32, %arg1: i32) -> (i32, i32) {
    %c0_i32 = arith.constant 0 : i32
    %c0_i32_0 = arith.constant 0 : i32
    %c0_i32_1 = arith.constant 0 : i32
    return %c0_i32, %c0_i32_0 : i32, i32
  }
  func.func @transform_5(%arg0: i32, %arg1: i32) -> (i32, i32) {
    %c0_i32 = arith.constant 0 : i32
    %c0_i32_0 = arith.constant 0 : i32
    return %arg0, %c0_i32 : i32, i32
  }
}

</mosaic_0001>

<llo_original>
// kernel: tpu_custom_call.1
$region0: #{tpu_custom_call.1}
  #allocation0 [shape = 'u32[]', space=smem, size = 0x4, offset = 0x4, fixed_abs, tag = 'smem constant byte address 0x4 - core index']
  #allocation1 [shape = 'u32[144,128]{1,0:T(1,128)}', space=vmem, size = 0x12000, scoped, tag = 'internal scratch']
  #allocation2 [shape = 'bf16[64,256]{1,0:T(8,128)(2,1)}', space=vmem, size = 0x8000, scoped, tag = 'scratch operand']
  #allocation3 [shape = 'f32[64,256]{1,0:T(8,128)}', space=vmem, size = 0x10000, scoped, tag = 'scratch operand']
  %s0 = inlined_call_operand.hbm [shape: f32[512,256], index: 0, kind: input, shape index: {}]
  %s1 = inlined_call_operand.hbm [shape: bf16[256,512], index: 1, kind: input, shape index: {}]
  %s2 = inlined_call_operand.hbm [shape: f32[1,512], index: 2, kind: input, shape index: {}]
  %s3 = inlined_call_operand.hbm [shape: bf16[512,256], index: 3, kind: input, shape index: {}]
  %s4 = inlined_call_operand.vmem [shape: f32[1,256], index: 4, kind: input, shape index: {}]
  %s5 = inlined_call_operand.hbm [shape: f32[512,256], index: 5, kind: output, shape index: {}]
  %s6 = sld [smem:[#allocation0]]
  $region77: #{tpu_custom_call.1} parent=0
    _
  %s8 = ssub.s32 1, %s6
  %s9 = scalar_select 0, %s8, %s6
  $region1: #{tpu_custom_call.1} parent=0
    #allocation4 [shape = 'u8[131072]{0}', space=vmem, size = 0x20000, scoped, tag = 'input window, operand 0']
    #allocation5 [shape = 's32[2]{0}', space=sflag, size = 0x8, scoped, tag = 'scoped memory for tpu_custom_call.1']
    #allocation6 [shape = 's32[2]{0}', space=sflag, size = 0x8, scoped, tag = 'scoped memory for tpu_custom_call.1']
    #allocation7 [shape = 'u8[262144]{0}', space=vmem, size = 0x40000, scoped, tag = 'input window, operand 1, single buffered']
    #allocation8 [shape = 's32[1]{0}', space=sflag, size = 0x4, scoped, tag = 'scoped memory for tpu_custom_call.1']
    #allocation9 [shape = 'u8[2048]{0}', space=vmem, size = 0x800, scoped, tag = 'input window, operand 2, single buffered']
    #allocation10 [shape = 'u8[262144]{0}', space=vmem, size = 0x40000, scoped, tag = 'input window, operand 3, single buffered']
    #allocation11 [shape = 's32[1]{0}', space=sflag, size = 0x4, scoped, tag = 'scoped memory for tpu_custom_call.1']
    #allocation12 [shape = 'u8[131072]{0}', space=vmem, size = 0x20000, scoped, tag = 'output window, operand 0']
    %10 = vsyncpa [#allocation5], 0
    %s11 = scalar_lea.sflag [#allocation5], 1
    %12 = vsyncpa %s11, 0
    %13 = vsyncpa [#allocation8], 0
    %14 = vsyncpa [#allocation11], 0
    %15 = vsyncpa [#allocation6], 0
    %s16 = scalar_lea.sflag [#allocation6], 1
    %17 = vsyncpa %s16, 0
    loop: start=0, step=1, limit=10
    $region2: #{tpu_custom_call.1} parent=1 // loop_pre_header
      _
    $region3: #{tpu_custom_call.1} parent=1 // loop_header
      %s19 = sphi 0, %s23
      %p20 = scmp.ge.s32.totalorder %s19, 10
      %s26 = sphi 0, %s38
      %s27 = sphi 0, %s34
      %s28 = sphi 0, %s26
      %s29 = sphi 0, %s27
      %s30 = sphi 0, %s28
      %s31 = sphi 0, %s29
      %s41 = sphi 0, %s43
      %s44 = sphi 0, %s41
      %s45 = sphi 0, %s44
      %s61 = sphi 0, %s45
      %s67 = sphi 0, %s69
      %s70 = sphi 0, %s67
      %s71 = sphi 0, %s70
      %s87 = sphi 0, %s71
      %s93 = sphi 0, %s95
      %s96 = sphi 0, %s93
      %s97 = sphi 0, %s96
      %s113 = sphi 0, %s97
      %s119 = sphi 0, %s121
      %s122 = sphi 0, %s119
      %s123 = sphi 0, %s122
      %s139 = sphi 0, %s123
      %s143 = sphi 0, %s143
      %s145 = sphi 0, %s143
      %s146 = sphi 0, %s145
      %s160 = sphi 0, %s146
      %s166 = sphi 0, %s168
      %s169 = sphi 0, %s166
      %s170 = sphi 0, %s169
      %s186 = sphi 0, %s170
    $region4: #{tpu_custom_call.1} parent=1 // loop_header_branch
      %22 = sbr.rel (%p20) target = $region8
    $region5: #{tpu_custom_call.1} parent=1 // loop_body
      %s24 = ssub.s32 %s19, 1
      %s25 = ssub.s32 %s19, 2
      %s32 = sadd.s32 1, %s27
      %p33 = scmp.ge.s32.totalorder %s32, 1
      %s34 = scalar_select %p33, 0, %s32
      %s35 = sadd.s32 1, %s26
      %s36 = scalar_select %p33, %s35, %s26
      %p37 = scmp.ge.s32.totalorder %s36, 8
      %s38 = scalar_select %p37, 0, %s36
      %s39 = ssub.s32 %s26, %s38
      %p40 = scmp.eq.s32.totalorder %s39, 0
      %s42 = sadd.s32 %s41, 1
      %s43 = scalar_select %p40, %s41, %s42
      %p46 = pneg %p40
      %p47 = scmp.eq.s32.totalorder %s19, 7
      %p48 = por %p46, %p47
      %p49 = scmp.ne.s32.totalorder %s41, %s44
      %p50 = scmp.eq.s32.totalorder %s19, 0
      %p51 = por %p49, %p50
      %p52 = scmp.ne.s32.totalorder %s41, %s44
      %p53 = scmp.eq.s32.totalorder %s24, 7
      %p54 = por %p52, %p53
      %p55 = scmp.ne.s32.totalorder %s44, %s45
      %p56 = scmp.eq.s32.totalorder %s24, 0
      %p57 = por %p55, %p56
      %p58 = scmp.ne.s32.totalorder %s44, %s45
      %p59 = scmp.eq.s32.totalorder %s25, 7
      %p60 = por %p58, %p59
      %p62 = scmp.ne.s32.totalorder %s45, %s61
      %p63 = scmp.eq.s32.totalorder %s25, 0
      %p64 = por %p62, %p63
      %s65 = ssub.s32 %s27, %s34
      %p66 = scmp.eq.s32.totalorder %s65, 0
      %s68 = sadd.s32 %s67, 1
      %s69 = scalar_select %p66, %s67, %s68
      %p72 = pneg %p66
      %p73 = scmp.eq.s32.totalorder %s19, 7
      %p74 = por %p72, %p73
      %p75 = scmp.ne.s32.totalorder %s67, %s70
      %p76 = scmp.eq.s32.totalorder %s19, 0
      %p77 = por %p75, %p76
      %p78 = scmp.ne.s32.totalorder %s67, %s70
      %p79 = scmp.eq.s32.totalorder %s24, 7
      %p80 = por %p78, %p79
      %p81 = scmp.ne.s32.totalorder %s70, %s71
      %p82 = scmp.eq.s32.totalorder %s24, 0
      %p83 = por %p81, %p82
      %p84 = scmp.ne.s32.totalorder %s70, %s71
      %p85 = scmp.eq.s32.totalorder %s25, 7
      %p86 = por %p84, %p85
      %p88 = scmp.ne.s32.totalorder %s71, %s87
      %p89 = scmp.eq.s32.totalorder %s25, 0
      %p90 = por %p88, %p89
      %s91 = ssub.s32 %s27, %s34
      %p92 = scmp.eq.s32.totalorder %s91, 0
      %s94 = sadd.s32 %s93, 1
      %s95 = scalar_select %p92, %s93, %s94
      %p98 = pneg %p92
      %p99 = scmp.eq.s32.totalorder %s19, 7
      %p100 = por %p98, %p99
      %p101 = scmp.ne.s32.totalorder %s93, %s96
      %p102 = scmp.eq.s32.totalorder %s19, 0
      %p103 = por %p101, %p102
      %p104 = scmp.ne.s32.totalorder %s93, %s96
      %p105 = scmp.eq.s32.totalorder %s24, 7
      %p106 = por %p104, %p105
      %p107 = scmp.ne.s32.totalorder %s96, %s97
      %p108 = scmp.eq.s32.totalorder %s24, 0
      %p109 = por %p107, %p108
      %p110 = scmp.ne.s32.totalorder %s96, %s97
      %p111 = scmp.eq.s32.totalorder %s25, 7
      %p112 = por %p110, %p111
      %p114 = scmp.ne.s32.totalorder %s97, %s113
      %p115 = scmp.eq.s32.totalorder %s25, 0
      %p116 = por %p114, %p115
      %s117 = ssub.s32 %s27, %s34
      %p118 = scmp.eq.s32.totalorder %s117, 0
      %s120 = sadd.s32 %s119, 1
      %s121 = scalar_select %p118, %s119, %s120
      %p124 = pneg %p118
      %p125 = scmp.eq.s32.totalorder %s19, 7
      %p126 = por %p124, %p125
      %p127 = scmp.ne.s32.totalorder %s119, %s122
      %p128 = scmp.eq.s32.totalorder %s19, 0
      %p129 = por %p127, %p128
      %p130 = scmp.ne.s32.totalorder %s119, %s122
      %p131 = scmp.eq.s32.totalorder %s24, 7
      %p132 = por %p130, %p131
      %p133 = scmp.ne.s32.totalorder %s122, %s123
      %p134 = scmp.eq.s32.totalorder %s24, 0
      %p135 = por %p133, %p134
      %p136 = scmp.ne.s32.totalorder %s122, %s123
      %p137 = scmp.eq.s32.totalorder %s25, 7
      %p138 = por %p136, %p137
      %p140 = scmp.ne.s32.totalorder %s123, %s139
      %p141 = scmp.eq.s32.totalorder %s25, 0
      %p142 = por %p140, %p141
      %s144 = sadd.s32 %s143, 1
      %p147 = scmp.eq.s32.totalorder %s19, 7
      %p148 = scmp.ne.s32.totalorder %s143, %s145
      %p149 = scmp.eq.s32.totalorder %s19, 0
      %p150 = por %p148, %p149
      %p151 = scmp.ne.s32.totalorder %s143, %s145
      %p152 = scmp.eq.s32.totalorder %s24, 7
      %p153 = por %p151, %p152
      %p154 = scmp.ne.s32.totalorder %s145, %s146
      %p155 = scmp.eq.s32.totalorder %s24, 0
      %p156 = por %p154, %p155
      %p157 = scmp.ne.s32.totalorder %s145, %s146
      %p158 = scmp.eq.s32.totalorder %s25, 7
      %p159 = por %p157, %p158
      %p161 = scmp.ne.s32.totalorder %s146, %s160
      %p162 = scmp.eq.s32.totalorder %s25, 0
      %p163 = por %p161, %p162
      %s164 = ssub.s32 %s26, %s38
      %p165 = scmp.eq.s32.totalorder %s164, 0
      %s167 = sadd.s32 %s166, 1
      %s168 = scalar_select %p165, %s166, %s167
      %p171 = pneg %p165
      %p172 = scmp.eq.s32.totalorder %s19, 7
      %p173 = por %p171, %p172
      %p174 = scmp.ne.s32.totalorder %s166, %s169
      %p175 = scmp.eq.s32.totalorder %s19, 0
      %p176 = por %p174, %p175
      %p177 = scmp.ne.s32.totalorder %s166, %s169
      %p178 = scmp.eq.s32.totalorder %s24, 7
      %p179 = por %p177, %p178
      %p180 = scmp.ne.s32.totalorder %s169, %s170
      %p181 = scmp.eq.s32.totalorder %s24, 0
      %p182 = por %p180, %p181
      %p183 = scmp.ne.s32.totalorder %s169, %s170
      %p184 = scmp.eq.s32.totalorder %s25, 7
      %p185 = por %p183, %p184
      %p187 = scmp.ne.s32.totalorder %s170, %s186
      %p188 = scmp.eq.s32.totalorder %s25, 0
      %p189 = por %p187, %p188
      %p190 = scmp.le.s32.totalorder 1, %s19
      %p191 = scmp.lt.s32.totalorder %s19, 9
      %p192 = pnand %p190, %p191
      %p193 = pneg %p192
      // Predicated region
      $region9: #{tpu_custom_call.1} parent=5 // pred_check
        _
      $region10: #{tpu_custom_call.1} parent=5 // pred_check_branch
        %195 = sbr.rel (%p192) target = $region12
      $region11: #{tpu_custom_call.1} parent=5 // pred_region
        %s196 = ssub.s32 %s19, 1
        // Predicated region
        $region13: #{tpu_custom_call.1} parent=11 // pred_check
          %p197 = pneg %p83
        $region14: #{tpu_custom_call.1} parent=11 // pred_check_branch
          %199 = sbr.rel (%p197) target = $region16
        $region15: #{tpu_custom_call.1} parent=11 // pred_region
          %s200 = smul.u32 4, %s29
          %s202 = ssub.s32 8192, 8192
          %203 = vsyncadd [#allocation8], %s202
          %s204 = smul.addr %s200, 64
          %s205 = scalar_lea.hbm %s1, %s204
          %s206 = sshll.u32 [#allocation7], 4
          %s207 = int_to_ptr.vmem [resolvable:$true] %s206
          %212 = dma.hbm_to_vmem [thread:$0]  %s205, 8192, %s207, [#allocation8], 256, 256, 16
        $region16: #{tpu_custom_call.1} parent=11 // pred_fallthru
          _
        // Predicated region
        $region17: #{tpu_custom_call.1} parent=11 // pred_check
          %p213 = pneg %p109
        $region18: #{tpu_custom_call.1} parent=11 // pred_check_branch
          %215 = sbr.rel (%p213) target = $region20
        $region19: #{tpu_custom_call.1} parent=11 // pred_region
          %s216 = smul.u32 4, %s29
          %s218 = ssub.s32 64, 64
          %219 = vsyncadd [#allocation8], %s218
          %s220 = smul.addr %s216, 16
          %s221 = scalar_lea.hbm %s2, %s220
          %s223 = sshll.u32 [#allocation9], 4
          %s224 = int_to_ptr.vmem [resolvable:$true] %s223
          %226 = dma.hbm_to_vmem [thread:$0]  %s221, 64, %s224, [#allocation8]
        $region20: #{tpu_custom_call.1} parent=11 // pred_fallthru
          _
        // Predicated region
        $region21: #{tpu_custom_call.1} parent=11 // pred_check
          %p227 = pneg %p135
        $region22: #{tpu_custom_call.1} parent=11 // pred_check_branch
          %229 = sbr.rel (%p227) target = $region24
        $region23: #{tpu_custom_call.1} parent=11 // pred_region
          %s230 = smul.u32 64, %s29
          %s232 = ssub.s32 8192, 8192
          %233 = vsyncadd [#allocation11], %s232
          %s234 = smul.addr %s230, 2
          %s235 = smul.addr %s234, 64
          %s236 = scalar_lea.hbm %s3, %s235
          %s237 = sshll.u32 [#allocation10], 4
          %s238 = int_to_ptr.vmem [resolvable:$true] %s237
          %243 = dma.hbm_to_vmem [thread:$0]  %s236, 8192, %s238, [#allocation11], 128, 128, 8
        $region24: #{tpu_custom_call.1} parent=11 // pred_fallthru
          _
        // Predicated region
        $region25: #{tpu_custom_call.1} parent=11 // pred_check
          %p244 = pneg %p156
        $region26: #{tpu_custom_call.1} parent=11 // pred_check_branch
          %246 = sbr.rel (%p244) target = $region28
        $region27: #{tpu_custom_call.1} parent=11 // pred_region
          _
        $region28: #{tpu_custom_call.1} parent=11 // pred_fallthru
          _
      $region12: #{tpu_custom_call.1} parent=5 // pred_fallthru
        _
      %p247 = scmp.lt.s32.totalorder %s19, 8
      // Predicated region
      $region29: #{tpu_custom_call.1} parent=5 // pred_check
        %p248 = pneg %p247
      $region30: #{tpu_custom_call.1} parent=5 // pred_check_branch
        %250 = sbr.rel (%p248) target = $region32
      $region31: #{tpu_custom_call.1} parent=5 // pred_region
        // Predicated region
        $region33: #{tpu_custom_call.1} parent=31 // pred_check
          %p251 = pneg %p51
        $region34: #{tpu_custom_call.1} parent=31 // pred_check_branch
          %253 = sbr.rel (%p251) target = $region36
        $region35: #{tpu_custom_call.1} parent=31 // pred_region
          %s254 = sand.u32 %s41, 1
          %s255 = scalar_lea.sflag [#allocation5], %s254
          %s256 = sand.u32 %s41, 1
          %s257 = smul.addr %s256, 128
          %s258 = scalar_lea.vmem [#allocation4], %s257
          %s259 = smul.u32 8, %s26
          %s261 = ssub.s32 2048, 2048
          %262 = vsyncadd %s255, %s261
          %s263 = smul.addr %s259, 2
          %s264 = smul.addr %s263, 128
          %s265 = scalar_lea.hbm %s0, %s264
          %s266 = sshll.u32 %s258, 4
          %s267 = int_to_ptr.vmem [resolvable:$true] %s266
          %272 = dma.hbm_to_vmem [thread:$0]  %s265, 2048, %s267, %s255, 256, 256, 16
        $region36: #{tpu_custom_call.1} parent=31 // pred_fallthru
          _
      $region32: #{tpu_custom_call.1} parent=5 // pred_fallthru
        _
      %p273 = scmp.le.s32.totalorder 1, %s19
      %p274 = scmp.lt.s32.totalorder %s19, 9
      %p275 = pnand %p273, %p274
      %p276 = pneg %p275
      // Predicated region
      $region37: #{tpu_custom_call.1} parent=5 // pred_check
        _
      $region38: #{tpu_custom_call.1} parent=5 // pred_check_branch
        %278 = sbr.rel (%p275) target = $region40
      $region39: #{tpu_custom_call.1} parent=5 // pred_region
        %s279 = ssub.s32 %s19, 1
        %s280 = sand.u32 %s44, 1
        %s281 = scalar_lea.sflag [#allocation5], %s280
        %s282 = sand.u32 %s44, 1
        %s283 = smul.addr %s282, 128
        %s284 = scalar_lea.vmem [#allocation4], %s283
        // Predicated region
        $region41: #{tpu_custom_call.1} parent=39 // pred_check
          %p285 = pneg %p57
        $region42: #{tpu_custom_call.1} parent=39 // pred_check_branch
          %287 = sbr.rel (%p285) target = $region44
        $region43: #{tpu_custom_call.1} parent=39 // pred_region
          %288 = dma.done %s281, 2048
        $region44: #{tpu_custom_call.1} parent=39 // pred_fallthru
          _
        // Predicated region
        $region45: #{tpu_custom_call.1} parent=39 // pred_check
          %p289 = pneg %p83
        $region46: #{tpu_custom_call.1} parent=39 // pred_check_branch
          %291 = sbr.rel (%p289) target = $region48
        $region47: #{tpu_custom_call.1} parent=39 // pred_region
          %292 = dma.done [#allocation8], 8192
        $region48: #{tpu_custom_call.1} parent=39 // pred_fallthru
          _
        // Predicated region
        $region49: #{tpu_custom_call.1} parent=39 // pred_check
          %p293 = pneg %p109
        $region50: #{tpu_custom_call.1} parent=39 // pred_check_branch
          %295 = sbr.rel (%p293) target = $region52
        $region51: #{tpu_custom_call.1} parent=39 // pred_region
          %296 = dma.done [#allocation8], 64
        $region52: #{tpu_custom_call.1} parent=39 // pred_fallthru
          _
        // Predicated region
        $region53: #{tpu_custom_call.1} parent=39 // pred_check
          %p297 = pneg %p135
        $region54: #{tpu_custom_call.1} parent=39 // pred_check_branch
          %299 = sbr.rel (%p297) target = $region56
        $region55: #{tpu_custom_call.1} parent=39 // pred_region
          %300 = dma.done [#allocation11], 8192
        $region56: #{tpu_custom_call.1} parent=39 // pred_fallthru
          _
        %s301 = sand.u32 %s44, 1
        %s302 = scalar_lea.sflag [#allocation5], %s301
        %s303 = sand.u32 %s44, 1
        %s304 = smul.addr %s303, 128
        %s305 = scalar_lea.vmem [#allocation4], %s304
        %p306 = pneg %p57
        %p307 = pneg %p54
        %p308 = pneg %p83
        %p309 = pneg %p80
        %p310 = pneg %p109
        %p311 = pneg %p106
        %p312 = pneg %p135
        %p313 = pneg %p132
        %p314 = pneg %p156
        %p315 = pneg %p153
        %p316 = pneg %p182
        %p317 = pneg %p179
        %s318 = sand.u32 %s169, 1
        %s319 = scalar_lea.sflag [#allocation6], %s318
        %s320 = sand.u32 %s169, 1
        %s321 = smul.addr %s320, 128
        %s322 = scalar_lea.vmem [#allocation12], %s321
        %s323 = smul.u32 8, %s28
        %s324 = smul.u32 4, %s29
        %s325 = smul.u32 4, %s29
        %s326 = smul.u32 64, %s29
        %s327 = smul.u32 8, %s28
        %p328 = scmp.eq.s32.totalorder %s29, 0
        // Predicated region
        $region57: #{tpu_custom_call.1} parent=39 // pred_check
          %p329 = pneg %p328
        $region58: #{tpu_custom_call.1} parent=39 // pred_check_branch
          %331 = sbr.rel (%p329) target = $region60
        $region59: #{tpu_custom_call.1} parent=39 // pred_region
          %v332 = vld [vmem:[%s284] sm:$0xff]
          %v333 = vld [vmem:[%s284 + $0x8] sm:$0xff]
          %v334 = vld [vmem:[%s284 + $0x10] sm:$0xff]
          %v335 = vld [vmem:[%s284 + $0x18] sm:$0xff]
          %v336 = vld [vmem:[%s284 + $0x20] sm:$0xff]
          %v337 = vld [vmem:[%s284 + $0x28] sm:$0xff]
          %v338 = vld [vmem:[%s284 + $0x30] sm:$0xff]
          %v339 = vld [vmem:[%s284 + $0x38] sm:$0xff]
          %v340 = vld [vmem:[%s284 + $0x40] sm:$0xff]
          %v341 = vld [vmem:[%s284 + $0x48] sm:$0xff]
          %v342 = vld [vmem:[%s284 + $0x50] sm:$0xff]
          %v343 = vld [vmem:[%s284 + $0x58] sm:$0xff]
          %v344 = vld [vmem:[%s284 + $0x60] sm:$0xff]
          %v345 = vld [vmem:[%s284 + $0x68] sm:$0xff]
          %v346 = vld [vmem:[%s284 + $0x70] sm:$0xff]
          %v347 = vld [vmem:[%s284 + $0x78] sm:$0xff]
          %v348 = vadd.f32 %v332, %v333
          %349 = vadd.xlane.f32.xlu0 %v348
          %v350 = vpop.xlane.xlu0 %349
          %v351 = vadd.f32 %v334, %v335
          %352 = vadd.xlane.f32.xlu0 %v351
          %v353 = vpop.xlane.xlu0 %352
          %v354 = vadd.f32 %v336, %v337
          %355 = vadd.xlane.f32.xlu0 %v354
          %v356 = vpop.xlane.xlu0 %355
          %v357 = vadd.f32 %v338, %v339
          %358 = vadd.xlane.f32.xlu0 %v357
          %v359 = vpop.xlane.xlu0 %358
          %v360 = vadd.f32 %v340, %v341
          %361 = vadd.xlane.f32.xlu0 %v360
          %v362 = vpop.xlane.xlu0 %361
          %v363 = vadd.f32 %v342, %v343
          %364 = vadd.xlane.f32.xlu0 %v363
          %v365 = vpop.xlane.xlu0 %364
          %v366 = vadd.f32 %v344, %v345
          %367 = vadd.xlane.f32.xlu0 %v366
          %v368 = vpop.xlane.xlu0 %367
          %v369 = vadd.f32 %v346, %v347
          %370 = vadd.xlane.f32.xlu0 %v369
          %v371 = vpop.xlane.xlu0 %370
          %v372 = vrcp.pop 256.0
          %v373 = vmul.f32 %v350, %v372
          %v374 = vmul.f32 %v353, %v372
          %v375 = vmul.f32 %v356, %v372
          %v376 = vmul.f32 %v359, %v372
          %v377 = vmul.f32 %v362, %v372
          %v378 = vmul.f32 %v365, %v372
          %v379 = vmul.f32 %v368, %v372
          %v380 = vmul.f32 %v371, %v372
          %v381 = vsub.f32 %v332, %v373
          %v382 = vsub.f32 %v333, %v373
          %v383 = vsub.f32 %v334, %v374
          %v384 = vsub.f32 %v335, %v374
          %v385 = vsub.f32 %v336, %v375
          %v386 = vsub.f32 %v337, %v375
          %v387 = vsub.f32 %v338, %v376
          %v388 = vsub.f32 %v339, %v376
          %v389 = vsub.f32 %v340, %v377
          %v390 = vsub.f32 %v341, %v377
          %v391 = vsub.f32 %v342, %v378
          %v392 = vsub.f32 %v343, %v378
          %v393 = vsub.f32 %v344, %v379
          %v394 = vsub.f32 %v345, %v379
          %v395 = vsub.f32 %v346, %v380
          %v396 = vsub.f32 %v347, %v380
          %v397 = vmul.f32 %v381, %v381
          %v398 = vmul.f32 %v382, %v382
          %v399 = vmul.f32 %v383, %v383
          %v400 = vmul.f32 %v384, %v384
          %v401 = vmul.f32 %v385, %v385
          %v402 = vmul.f32 %v386, %v386
          %v403 = vmul.f32 %v387, %v387
          %v404 = vmul.f32 %v388, %v388
          %v405 = vmul.f32 %v389, %v389
          %v406 = vmul.f32 %v390, %v390
          %v407 = vmul.f32 %v391, %v391
          %v408 = vmul.f32 %v392, %v392
          %v409 = vmul.f32 %v393, %v393
          %v410 = vmul.f32 %v394, %v394
          %v411 = vmul.f32 %v395, %v395
          %v412 = vmul.f32 %v396, %v396
          %v413 = vadd.f32 %v397, %v398
          %414 = vadd.xlane.f32.xlu0 %v413
          %v415 = vpop.xlane.xlu0 %414
          %v416 = vadd.f32 %v399, %v400
          %417 = vadd.xlane.f32.xlu0 %v416
          %v418 = vpop.xlane.xlu0 %417
          %v419 = vadd.f32 %v401, %v402
          %420 = vadd.xlane.f32.xlu0 %v419
          %v421 = vpop.xlane.xlu0 %420
          %v422 = vadd.f32 %v403, %v404
          %423 = vadd.xlane.f32.xlu0 %v422
          %v424 = vpop.xlane.xlu0 %423
          %v425 = vadd.f32 %v405, %v406
          %426 = vadd.xlane.f32.xlu0 %v425
          %v427 = vpop.xlane.xlu0 %426
          %v428 = vadd.f32 %v407, %v408
          %429 = vadd.xlane.f32.xlu0 %v428
          %v430 = vpop.xlane.xlu0 %429
          %v431 = vadd.f32 %v409, %v410
          %432 = vadd.xlane.f32.xlu0 %v431
          %v433 = vpop.xlane.xlu0 %432
          %v434 = vadd.f32 %v411, %v412
          %435 = vadd.xlane.f32.xlu0 %v434
          %v436 = vpop.xlane.xlu0 %435
          %v437 = vmul.f32 %v415, %v372
          %v438 = vmul.f32 %v418, %v372
          %v439 = vmul.f32 %v421, %v372
          %v440 = vmul.f32 %v424, %v372
          %v441 = vmul.f32 %v427, %v372
          %v442 = vmul.f32 %v430, %v372
          %v443 = vmul.f32 %v433, %v372
          %v444 = vmul.f32 %v436, %v372
          %v445 = vadd.f32 %v437, 1e-05
          %v446 = vadd.f32 %v438, 1e-05
          %v447 = vadd.f32 %v439, 1e-05
          %v448 = vadd.f32 %v440, 1e-05
          %v449 = vadd.f32 %v441, 1e-05
          %v450 = vadd.f32 %v442, 1e-05
          %v451 = vadd.f32 %v443, 1e-05
          %v452 = vadd.f32 %v444, 1e-05
          %v453 = vrsqrt.pop %v445
          %v454 = vrsqrt.pop %v446
          %v455 = vrsqrt.pop %v447
          %v456 = vrsqrt.pop %v448
          %v457 = vrsqrt.pop %v449
          %v458 = vrsqrt.pop %v450
          %v459 = vrsqrt.pop %v451
          %v460 = vrsqrt.pop %v452
          %v461 = vmul.f32 %v381, %v453
          %v462 = vmul.f32 %v382, %v453
          %v463 = vmul.f32 %v383, %v454
          %v464 = vmul.f32 %v384, %v454
          %v465 = vmul.f32 %v385, %v455
          %v466 = vmul.f32 %v386, %v455
          %v467 = vmul.f32 %v387, %v456
          %v468 = vmul.f32 %v388, %v456
          %v469 = vmul.f32 %v389, %v457
          %v470 = vmul.f32 %v390, %v457
          %v471 = vmul.f32 %v391, %v458
          %v472 = vmul.f32 %v392, %v458
          %v473 = vmul.f32 %v393, %v459
          %v474 = vmul.f32 %v394, %v459
          %v475 = vmul.f32 %v395, %v460
          %v476 = vmul.f32 %v396, %v460
          %v477 = vpack.c.bf16 %v463, %v461
          %v478 = vpack.c.bf16 %v464, %v462
          %v479 = vpack.c.bf16 %v467, %v465
          %v480 = vpack.c.bf16 %v468, %v466
          %v481 = vpack.c.bf16 %v471, %v469
          %v482 = vpack.c.bf16 %v472, %v470
          %v483 = vpack.c.bf16 %v475, %v473
          %v484 = vpack.c.bf16 %v476, %v474
          %v493 = vunpack.c.l.b16 %v477
          %v494 = vunpack.c.l.b16 %v478
          %v495 = vunpack.c.h.b16 %v477
          %v496 = vunpack.c.h.b16 %v478
          %v497 = vunpack.c.l.b16 %v479
          %v498 = vunpack.c.l.b16 %v480
          %v499 = vunpack.c.h.b16 %v479
          %v500 = vunpack.c.h.b16 %v480
          %v501 = vunpack.c.l.b16 %v481
          %v502 = vunpack.c.l.b16 %v482
          %v503 = vunpack.c.h.b16 %v481
          %v504 = vunpack.c.h.b16 %v482
          %v505 = vunpack.c.l.b16 %v483
          %v506 = vunpack.c.l.b16 %v484
          %v507 = vunpack.c.h.b16 %v483
          %v508 = vunpack.c.h.b16 %v484
          %v509 = vpack.c.b16 %v494, %v493
          %v510 = vpack.c.b16 %v496, %v495
          %v511 = vpack.c.b16 %v498, %v497
          %v512 = vpack.c.b16 %v500, %v499
          %v513 = vpack.c.b16 %v502, %v501
          %v514 = vpack.c.b16 %v504, %v503
          %v515 = vpack.c.b16 %v506, %v505
          %v516 = vpack.c.b16 %v508, %v507
          %525 = vst [vmem:[#allocation2] sm:$0xff] %v509
          %526 = vst [vmem:[#allocation2 + $0x8] sm:$0xff] %v510
          %527 = vst [vmem:[#allocation2 + $0x10] sm:$0xff] %v511
          %528 = vst [vmem:[#allocation2 + $0x18] sm:$0xff] %v512
          %529 = vst [vmem:[#allocation2 + $0x20] sm:$0xff] %v513
          %530 = vst [vmem:[#allocation2 + $0x28] sm:$0xff] %v514
          %531 = vst [vmem:[#allocation2 + $0x30] sm:$0xff] %v515
          %532 = vst [vmem:[#allocation2 + $0x38] sm:$0xff] %v516
          %533 = vst [vmem:[#allocation3] sm:$0xff] 0.0
          %534 = vst [vmem:[#allocation3 + $0x8] sm:$0xff] 0.0
          %535 = vst [vmem:[#allocation3 + $0x10] sm:$0xff] 0.0
          %536 = vst [vmem:[#allocation3 + $0x18] sm:$0xff] 0.0
          %537 = vst [vmem:[#allocation3 + $0x20] sm:$0xff] 0.0
          %538 = vst [vmem:[#allocation3 + $0x28] sm:$0xff] 0.0
          %539 = vst [vmem:[#allocation3 + $0x30] sm:$0xff] 0.0
          %540 = vst [vmem:[#allocation3 + $0x38] sm:$0xff] 0.0
          %541 = vst [vmem:[#allocation3 + $0x40] sm:$0xff] 0.0
          %542 = vst [vmem:[#allocation3 + $0x48] sm:$0xff] 0.0
          %543 = vst [vmem:[#allocation3 + $0x50] sm:$0xff] 0.0
          %544 = vst [vmem:[#allocation3 + $0x58] sm:$0xff] 0.0
          %545 = vst [vmem:[#allocation3 + $0x60] sm:$0xff] 0.0
          %546 = vst [vmem:[#allocation3 + $0x68] sm:$0xff] 0.0
          %547 = vst [vmem:[#allocation3 + $0x70] sm:$0xff] 0.0
          %548 = vst [vmem:[#allocation3 + $0x78] sm:$0xff] 0.0
        $region60: #{tpu_custom_call.1} parent=39 // pred_fallthru
          _
        %v549 = vld [vmem:[#allocation2] sm:$0xff]
        %v550 = vld [vmem:[#allocation2 + $0x8] sm:$0xff]
        %v551 = vld [vmem:[#allocation2 + $0x10] sm:$0xff]
        %v552 = vld [vmem:[#allocation2 + $0x18] sm:$0xff]
        %v553 = vld [vmem:[#allocation2 + $0x20] sm:$0xff]
        %v554 = vld [vmem:[#allocation2 + $0x28] sm:$0xff]
        %v555 = vld [vmem:[#allocation2 + $0x30] sm:$0xff]
        %v556 = vld [vmem:[#allocation2 + $0x38] sm:$0xff]
        %v557 = vld [vmem:[#allocation7] sm:$0xff]
        %v558 = vld [vmem:[#allocation7 + $0x8] sm:$0xff]
        %v559 = vld [vmem:[#allocation7 + $0x10] sm:$0xff]
        %v560 = vld [vmem:[#allocation7 + $0x18] sm:$0xff]
        %v561 = vld [vmem:[#allocation7 + $0x20] sm:$0xff]
        %v562 = vld [vmem:[#allocation7 + $0x28] sm:$0xff]
        %v563 = vld [vmem:[#allocation7 + $0x30] sm:$0xff]
        %v564 = vld [vmem:[#allocation7 + $0x38] sm:$0xff]
        %v565 = vld [vmem:[#allocation7 + $0x40] sm:$0xff]
        %v566 = vld [vmem:[#allocation7 + $0x48] sm:$0xff]
        %v567 = vld [vmem:[#allocation7 + $0x50] sm:$0xff]
        %v568 = vld [vmem:[#allocation7 + $0x58] sm:$0xff]
        %v569 = vld [vmem:[#allocation7 + $0x60] sm:$0xff]
        %v570 = vld [vmem:[#allocation7 + $0x68] sm:$0xff]
        %v571 = vld [vmem:[#allocation7 + $0x70] sm:$0xff]
        %v572 = vld [vmem:[#allocation7 + $0x78] sm:$0xff]
        %v573 = vld [vmem:[#allocation7 + $0x80] sm:$0xff]
        %v574 = vld [vmem:[#allocation7 + $0x88] sm:$0xff]
        %v575 = vld [vmem:[#allocation7 + $0x90] sm:$0xff]
        %v576 = vld [vmem:[#allocation7 + $0x98] sm:$0xff]
        %v577 = vld [vmem:[#allocation7 + $0xa0] sm:$0xff]
        %v578 = vld [vmem:[#allocation7 + $0xa8] sm:$0xff]
        %v579 = vld [vmem:[#allocation7 + $0xb0] sm:$0xff]
        %v580 = vld [vmem:[#allocation7 + $0xb8] sm:$0xff]
        %v581 = vld [vmem:[#allocation7 + $0xc0] sm:$0xff]
        %v582 = vld [vmem:[#allocation7 + $0xc8] sm:$0xff]
        %v583 = vld [vmem:[#allocation7 + $0xd0] sm:$0xff]
        %v584 = vld [vmem:[#allocation7 + $0xd8] sm:$0xff]
        %v585 = vld [vmem:[#allocation7 + $0xe0] sm:$0xff]
        %v586 = vld [vmem:[#allocation7 + $0xe8] sm:$0xff]
        %v587 = vld [vmem:[#allocation7 + $0xf0] sm:$0xff]
        %v588 = vld [vmem:[#allocation7 + $0xf8] sm:$0xff]
        %v589 = vld [vmem:[#allocation7 + $0x100] sm:$0xff]
        %v590 = vld [vmem:[#allocation7 + $0x108] sm:$0xff]
        %v591 = vld [vmem:[#allocation7 + $0x110] sm:$0xff]
        %v592 = vld [vmem:[#allocation7 + $0x118] sm:$0xff]
        %v593 = vld [vmem:[#allocation7 + $0x120] sm:$0xff]
        %v594 = vld [vmem:[#allocation7 + $0x128] sm:$0xff]
        %v595 = vld [vmem:[#allocation7 + $0x130] sm:$0xff]
        %v596 = vld [vmem:[#allocation7 + $0x138] sm:$0xff]
        %v597 = vld [vmem:[#allocation7 + $0x140] sm:$0xff]
        %v598 = vld [vmem:[#allocation7 + $0x148] sm:$0xff]
        %v599 = vld [vmem:[#allocation7 + $0x150] sm:$0xff]
        %v600 = vld [vmem:[#allocation7 + $0x158] sm:$0xff]
        %v601 = vld [vmem:[#allocation7 + $0x160] sm:$0xff]
        %v602 = vld [vmem:[#allocation7 + $0x168] sm:$0xff]
        %v603 = vld [vmem:[#allocation7 + $0x170] sm:$0xff]
        %v604 = vld [vmem:[#allocation7 + $0x178] sm:$0xff]
        %v605 = vld [vmem:[#allocation7 + $0x180] sm:$0xff]
        %v606 = vld [vmem:[#allocation7 + $0x188] sm:$0xff]
        %v607 = vld [vmem:[#allocation7 + $0x190] sm:$0xff]
        %v608 = vld [vmem:[#allocation7 + $0x198] sm:$0xff]
        %v609 = vld [vmem:[#allocation7 + $0x1a0] sm:$0xff]
        %v610 = vld [vmem:[#allocation7 + $0x1a8] sm:$0xff]
        %v611 = vld [vmem:[#allocation7 + $0x1b0] sm:$0xff]
        %v612 = vld [vmem:[#allocation7 + $0x1b8] sm:$0xff]
        %v613 = vld [vmem:[#allocation7 + $0x1c0] sm:$0xff]
        %v614 = vld [vmem:[#allocation7 + $0x1c8] sm:$0xff]
        %v615 = vld [vmem:[#allocation7 + $0x1d0] sm:$0xff]
        %v616 = vld [vmem:[#allocation7 + $0x1d8] sm:$0xff]
        %v617 = vld [vmem:[#allocation7 + $0x1e0] sm:$0xff]
        %v618 = vld [vmem:[#allocation7 + $0x1e8] sm:$0xff]
        %v619 = vld [vmem:[#allocation7 + $0x1f0] sm:$0xff]
        %v620 = vld [vmem:[#allocation7 + $0x1f8] sm:$0xff]
        %v621 = vld [vmem:[#allocation9] sm:$0xf]
        %v623 = vlaneseq
        %v624 = vshrl.u32 %v623, 7
        %v625 = vsub.s32 0, %v624
        %v626 = vrot.slane %v621, %v625
        %v627 = vlaneseq
        %v628 = vshrl.u32 %v627, 7
        %v629 = vsub.s32 1, %v628
        %v630 = vrot.slane %v621, %v629
        %v631 = vlaneseq
        %v632 = vshrl.u32 %v631, 7
        %v633 = vsub.s32 2, %v632
        %v634 = vrot.slane %v621, %v633
        %v635 = vlaneseq
        %v636 = vshrl.u32 %v635, 7
        %v637 = vsub.s32 3, %v636
        %v638 = vrot.slane %v621, %v637
        %v651 = vunpack.c.l.b16 %v549
        %v652 = vunpack.c.h.b16 %v549
        %v653 = vunpack.c.l.b16 %v550
        %v654 = vunpack.c.h.b16 %v550
        %v655 = vunpack.c.l.b16 %v551
        %v656 = vunpack.c.h.b16 %v551
        %v657 = vunpack.c.l.b16 %v552
        %v658 = vunpack.c.h.b16 %v552
        %v659 = vunpack.c.l.b16 %v553
        %v660 = vunpack.c.h.b16 %v553
        %v661 = vunpack.c.l.b16 %v554
        %v662 = vunpack.c.h.b16 %v554
        %v663 = vunpack.c.l.b16 %v555
        %v664 = vunpack.c.h.b16 %v555
        %v665 = vunpack.c.l.b16 %v556
        %v666 = vunpack.c.h.b16 %v556
        %v667 = vpack.c.b16 %v653, %v651
        %v668 = vpack.c.b16 %v654, %v652
        %v669 = vpack.c.b16 %v657, %v655
        %v670 = vpack.c.b16 %v658, %v656
        %v671 = vpack.c.b16 %v661, %v659
        %v672 = vpack.c.b16 %v662, %v660
        %v673 = vpack.c.b16 %v665, %v663
        %v674 = vpack.c.b16 %v666, %v664
        %v747 = vunpack.c.l.b16 %v557
        %v748 = vunpack.c.h.b16 %v557
        %v749 = vunpack.c.l.b16 %v558
        %v750 = vunpack.c.h.b16 %v558
        %v751 = vunpack.c.l.b16 %v559
        %v752 = vunpack.c.h.b16 %v559
        %v753 = vunpack.c.l.b16 %v560
        %v754 = vunpack.c.h.b16 %v560
        %v755 = vunpack.c.l.b16 %v561
        %v756 = vunpack.c.h.b16 %v561
        %v757 = vunpack.c.l.b16 %v562
        %v758 = vunpack.c.h.b16 %v562
        %v759 = vunpack.c.l.b16 %v563
        %v760 = vunpack.c.h.b16 %v563
        %v761 = vunpack.c.l.b16 %v564
        %v762 = vunpack.c.h.b16 %v564
        %v763 = vunpack.c.l.b16 %v565
        %v764 = vunpack.c.h.b16 %v565
        %v765 = vunpack.c.l.b16 %v566
        %v766 = vunpack.c.h.b16 %v566
        %v767 = vunpack.c.l.b16 %v567
        %v768 = vunpack.c.h.b16 %v567
        %v769 = vunpack.c.l.b16 %v568
        %v770 = vunpack.c.h.b16 %v568
        %v771 = vunpack.c.l.b16 %v569
        %v772 = vunpack.c.h.b16 %v569
        %v773 = vunpack.c.l.b16 %v570
        %v774 = vunpack.c.h.b16 %v570
        %v775 = vunpack.c.l.b16 %v571
        %v776 = vunpack.c.h.b16 %v571
        %v777 = vunpack.c.l.b16 %v572
        %v778 = vunpack.c.h.b16 %v572
        %v779 = vunpack.c.l.b16 %v573
        %v780 = vunpack.c.h.b16 %v573
        %v781 = vunpack.c.l.b16 %v574
        %v782 = vunpack.c.h.b16 %v574
        %v783 = vunpack.c.l.b16 %v575
        %v784 = vunpack.c.h.b16 %v575
        %v785 = vunpack.c.l.b16 %v576
        %v786 = vunpack.c.h.b16 %v576
        %v787 = vunpack.c.l.b16 %v577
        %v788 = vunpack.c.h.b16 %v577
        %v789 = vunpack.c.l.b16 %v578
        %v790 = vunpack.c.h.b16 %v578
        %v791 = vunpack.c.l.b16 %v579
        %v792 = vunpack.c.h.b16 %v579
        %v793 = vunpack.c.l.b16 %v580
        %v794 = vunpack.c.h.b16 %v580
        %v795 = vunpack.c.l.b16 %v581
        %v796 = vunpack.c.h.b16 %v581
        %v797 = vunpack.c.l.b16 %v582
        %v798 = vunpack.c.h.b16 %v582
        %v799 = vunpack.c.l.b16 %v583
        %v800 = vunpack.c.h.b16 %v583
        %v801 = vunpack.c.l.b16 %v584
        %v802 = vunpack.c.h.b16 %v584
        %v803 = vunpack.c.l.b16 %v585
        %v804 = vunpack.c.h.b16 %v585
        %v805 = vunpack.c.l.b16 %v586
        %v806 = vunpack.c.h.b16 %v586
        %v807 = vunpack.c.l.b16 %v587
        %v808 = vunpack.c.h.b16 %v587
        %v809 = vunpack.c.l.b16 %v588
        %v810 = vunpack.c.h.b16 %v588
        %v811 = vunpack.c.l.b16 %v589
        %v812 = vunpack.c.h.b16 %v589
        %v813 = vunpack.c.l.b16 %v590
        %v814 = vunpack.c.h.b16 %v590
        %v815 = vunpack.c.l.b16 %v591
        %v816 = vunpack.c.h.b16 %v591
        %v817 = vunpack.c.l.b16 %v592
        %v818 = vunpack.c.h.b16 %v592
        %v819 = vunpack.c.l.b16 %v593
        %v820 = vunpack.c.h.b16 %v593
        %v821 = vunpack.c.l.b16 %v594
        %v822 = vunpack.c.h.b16 %v594
        %v823 = vunpack.c.l.b16 %v595
        %v824 = vunpack.c.h.b16 %v595
        %v825 = vunpack.c.l.b16 %v596
        %v826 = vunpack.c.h.b16 %v596
        %v827 = vunpack.c.l.b16 %v597
        %v828 = vunpack.c.h.b16 %v597
        %v829 = vunpack.c.l.b16 %v598
        %v830 = vunpack.c.h.b16 %v598
        %v831 = vunpack.c.l.b16 %v599
        %v832 = vunpack.c.h.b16 %v599
        %v833 = vunpack.c.l.b16 %v600
        %v834 = vunpack.c.h.b16 %v600
        %v835 = vunpack.c.l.b16 %v601
        %v836 = vunpack.c.h.b16 %v601
        %v837 = vunpack.c.l.b16 %v602
        %v838 = vunpack.c.h.b16 %v602
        %v839 = vunpack.c.l.b16 %v603
        %v840 = vunpack.c.h.b16 %v603
        %v841 = vunpack.c.l.b16 %v604
        %v842 = vunpack.c.h.b16 %v604
        %v843 = vunpack.c.l.b16 %v605
        %v844 = vunpack.c.h.b16 %v605
        %v845 = vunpack.c.l.b16 %v606
        %v846 = vunpack.c.h.b16 %v606
        %v847 = vunpack.c.l.b16 %v607
        %v848 = vunpack.c.h.b16 %v607
        %v849 = vunpack.c.l.b16 %v608
        %v850 = vunpack.c.h.b16 %v608
        %v851 = vunpack.c.l.b16 %v609
        %v852 = vunpack.c.h.b16 %v609
        %v853 = vunpack.c.l.b16 %v610
        %v854 = vunpack.c.h.b16 %v610
        %v855 = vunpack.c.l.b16 %v611
        %v856 = vunpack.c.h.b16 %v611
        %v857 = vunpack.c.l.b16 %v612
        %v858 = vunpack.c.h.b16 %v612
        %v859 = vunpack.c.l.b16 %v613
        %v860 = vunpack.c.h.b16 %v613
        %v861 = vunpack.c.l.b16 %v614
        %v862 = vunpack.c.h.b16 %v614
        %v863 = vunpack.c.l.b16 %v615
        %v864 = vunpack.c.h.b16 %v615
        %v865 = vunpack.c.l.b16 %v616
        %v866 = vunpack.c.h.b16 %v616
        %v867 = vunpack.c.l.b16 %v617
        %v868 = vunpack.c.h.b16 %v617
        %v869 = vunpack.c.l.b16 %v618
        %v870 = vunpack.c.h.b16 %v618
        %v871 = vunpack.c.l.b16 %v619
        %v872 = vunpack.c.h.b16 %v619
        %v873 = vunpack.c.l.b16 %v620
        %v874 = vunpack.c.h.b16 %v620
        %v875 = vpack.c.b16 %v751, %v747
        %v876 = vpack.c.b16 %v752, %v748
        %v877 = vpack.c.b16 %v753, %v749
        %v878 = vpack.c.b16 %v754, %v750
        %v879 = vpack.c.b16 %v759, %v755
        %v880 = vpack.c.b16 %v760, %v756
        %v881 = vpack.c.b16 %v761, %v757
        %v882 = vpack.c.b16 %v762, %v758
        %v883 = vpack.c.b16 %v767, %v763
        %v884 = vpack.c.b16 %v768, %v764
        %v885 = vpack.c.b16 %v769, %v765
        %v886 = vpack.c.b16 %v770, %v766
        %v887 = vpack.c.b16 %v775, %v771
        %v888 = vpack.c.b16 %v776, %v772
        %v889 = vpack.c.b16 %v777, %v773
        %v890 = vpack.c.b16 %v778, %v774
        %v891 = vpack.c.b16 %v783, %v779
        %v892 = vpack.c.b16 %v784, %v780
        %v893 = vpack.c.b16 %v785, %v781
        %v894 = vpack.c.b16 %v786, %v782
        %v895 = vpack.c.b16 %v791, %v787
        %v896 = vpack.c.b16 %v792, %v788
        %v897 = vpack.c.b16 %v793, %v789
        %v898 = vpack.c.b16 %v794, %v790
        %v899 = vpack.c.b16 %v799, %v795
        %v900 = vpack.c.b16 %v800, %v796
        %v901 = vpack.c.b16 %v801, %v797
        %v902 = vpack.c.b16 %v802, %v798
        %v903 = vpack.c.b16 %v807, %v803
        %v904 = vpack.c.b16 %v808, %v804
        %v905 = vpack.c.b16 %v809, %v805
        %v906 = vpack.c.b16 %v810, %v806
        %v907 = vpack.c.b16 %v815, %v811
        %v908 = vpack.c.b16 %v816, %v812
        %v909 = vpack.c.b16 %v817, %v813
        %v910 = vpack.c.b16 %v818, %v814
        %v911 = vpack.c.b16 %v823, %v819
        %v912 = vpack.c.b16 %v824, %v820
        %v913 = vpack.c.b16 %v825, %v821
        %v914 = vpack.c.b16 %v826, %v822
        %v915 = vpack.c.b16 %v831, %v827
        %v916 = vpack.c.b16 %v832, %v828
        %v917 = vpack.c.b16 %v833, %v829
        %v918 = vpack.c.b16 %v834, %v830
        %v919 = vpack.c.b16 %v839, %v835
        %v920 = vpack.c.b16 %v840, %v836
        %v921 = vpack.c.b16 %v841, %v837
        %v922 = vpack.c.b16 %v842, %v838
        %v923 = vpack.c.b16 %v847, %v843
        %v924 = vpack.c.b16 %v848, %v844
        %v925 = vpack.c.b16 %v849, %v845
        %v926 = vpack.c.b16 %v850, %v846
        %v927 = vpack.c.b16 %v855, %v851
        %v928 = vpack.c.b16 %v856, %v852
        %v929 = vpack.c.b16 %v857, %v853
        %v930 = vpack.c.b16 %v858, %v854
        %v931 = vpack.c.b16 %v863, %v859
        %v932 = vpack.c.b16 %v864, %v860
        %v933 = vpack.c.b16 %v865, %v861
        %v934 = vpack.c.b16 %v866, %v862
        %v935 = vpack.c.b16 %v871, %v867
        %v936 = vpack.c.b16 %v872, %v868
        %v937 = vpack.c.b16 %v873, %v869
        %v938 = vpack.c.b16 %v874, %v870
        %1003 = vmatprep.subr.bf16.mxu0 %v904
        %1004 = vmatpush1.bf16.msra.mxu0 %v903
        %1005 = vmatprep.subr.bf16.mxu0 %v900
        %1006 = vmatpush1.bf16.msra.mxu0 %v899
        %1007 = vmatprep.subr.bf16.mxu0 %v896
        %1008 = vmatpush1.bf16.msra.mxu0 %v895
        %1009 = vmatprep.subr.bf16.mxu0 %v892
        %1010 = vmatpush1.bf16.msra.mxu0 %v891
        %1011 = vmatprep.subr.bf16.mxu0 %v888
        %1012 = vmatpush1.bf16.msra.mxu0 %v887
        %1013 = vmatprep.subr.bf16.mxu0 %v884
        %1014 = vmatpush1.bf16.msra.mxu0 %v883
        %1015 = vmatprep.subr.bf16.mxu0 %v880
        %1016 = vmatpush1.bf16.msra.mxu0 %v879
        %1017 = vmatprep.subr.bf16.mxu0 %v876
        %1018 = vmatpush1.bf16.msra.mxu0 %v875
        %1019 = vmatprep.subr.bf16.mxu0 %v936
        %1020 = vmatpush2.bf16.msra.mxu0 %v935
        %1021 = vmatprep.subr.bf16.mxu0 %v932
        %1022 = vmatpush2.bf16.msra.mxu0 %v931
        %1023 = vmatprep.subr.bf16.mxu0 %v928
        %1024 = vmatpush2.bf16.msra.mxu0 %v927
        %1025 = vmatprep.subr.bf16.mxu0 %v924
        %1026 = vmatpush2.bf16.msra.mxu0 %v923
        %1027 = vmatprep.subr.bf16.mxu0 %v920
        %1028 = vmatpush2.bf16.msra.mxu0 %v919
        %1029 = vmatprep.subr.bf16.mxu0 %v916
        %1030 = vmatpush2.bf16.msra.mxu0 %v915
        %1031 = vmatprep.subr.bf16.mxu0 %v912
        %1032 = vmatpush2.bf16.msra.mxu0 %v911
        %1033 = vmatprep.subr.bf16.mxu0 %v908
        %1034 = vmatpush2.bf16.msra.mxu0 %v907
        %1035 = vmatprep.mubr.bf16.mxu0 %v668
        %1036 = vmatmul.mubr.bf16.gmra.mxu0 %v667
        %v1037 = vpop.f32.mrf.mxu0
        %v1038 = vadd.f32 %v626, %v1037
        %v1039 = vpop.f32.mrf.mxu0
        %v1040 = vadd.f32 %v630, %v1039
        %v1041 = vpop.f32.mrf.mxu0
        %v1042 = vadd.f32 %v626, %v1041
        %v1043 = vpop.f32.mrf.mxu0
        %v1044 = vadd.f32 %v630, %v1043
        %1045 = vmatprep.mubr.bf16.mxu0 %v670
        %1046 = vmatmul.mubr.bf16.gmra.mxu0 %v669
        %v1047 = vpop.f32.mrf.mxu0
        %v1048 = vadd.f32 %v626, %v1047
        %v1049 = vpop.f32.mrf.mxu0
        %v1050 = vadd.f32 %v630, %v1049
        %v1051 = vpop.f32.mrf.mxu0
        %v1052 = vadd.f32 %v626, %v1051
        %v1053 = vpop.f32.mrf.mxu0
        %v1054 = vadd.f32 %v630, %v1053
        %1055 = vmatprep.mubr.bf16.mxu0 %v672
        %1056 = vmatmul.mubr.bf16.gmra.mxu0 %v671
        %v1057 = vpop.f32.mrf.mxu0
        %v1058 = vadd.f32 %v626, %v1057
        %v1059 = vpop.f32.mrf.mxu0
        %v1060 = vadd.f32 %v630, %v1059
        %v1061 = vpop.f32.mrf.mxu0
        %v1062 = vadd.f32 %v626, %v1061
        %v1063 = vpop.f32.mrf.mxu0
        %v1064 = vadd.f32 %v630, %v1063
        %1065 = vmatprep.mubr.bf16.mxu0 %v674
        %1066 = vmatmul.mubr.bf16.gmra.mxu0 %v673
        %v1067 = vpop.f32.mrf.mxu0
        %v1068 = vadd.f32 %v626, %v1067
        %v1069 = vpop.f32.mrf.mxu0
        %v1070 = vadd.f32 %v630, %v1069
        %v1071 = vpop.f32.mrf.mxu0
        %v1072 = vadd.f32 %v626, %v1071
        %v1073 = vpop.f32.mrf.mxu0
        %v1074 = vadd.f32 %v630, %v1073
        %1075 = vdwg.mxu0
        %1076 = vmatprep.subr.bf16.mxu0 %v906
        %1077 = vmatpush1.bf16.msra.mxu0 %v905
        %1078 = vmatprep.subr.bf16.mxu0 %v902
        %1079 = vmatpush1.bf16.msra.mxu0 %v901
        %1080 = vmatprep.subr.bf16.mxu0 %v898
        %1081 = vmatpush1.bf16.msra.mxu0 %v897
        %1082 = vmatprep.subr.bf16.mxu0 %v894
        %1083 = vmatpush1.bf16.msra.mxu0 %v893
        %1084 = vmatprep.subr.bf16.mxu0 %v890
        %1085 = vmatpush1.bf16.msra.mxu0 %v889
        %1086 = vmatprep.subr.bf16.mxu0 %v886
        %1087 = vmatpush1.bf16.msra.mxu0 %v885
        %1088 = vmatprep.subr.bf16.mxu0 %v882
        %1089 = vmatpush1.bf16.msra.mxu0 %v881
        %1090 = vmatprep.subr.bf16.mxu0 %v878
        %1091 = vmatpush1.bf16.msra.mxu0 %v877
        %1092 = vmatprep.subr.bf16.mxu0 %v938
        %1093 = vmatpush2.bf16.msra.mxu0 %v937
        %1094 = vmatprep.subr.bf16.mxu0 %v934
        %1095 = vmatpush2.bf16.msra.mxu0 %v933
        %1096 = vmatprep.subr.bf16.mxu0 %v930
        %1097 = vmatpush2.bf16.msra.mxu0 %v929
        %1098 = vmatprep.subr.bf16.mxu0 %v926
        %1099 = vmatpush2.bf16.msra.mxu0 %v925
        %1100 = vmatprep.subr.bf16.mxu0 %v922
        %1101 = vmatpush2.bf16.msra.mxu0 %v921
        %1102 = vmatprep.subr.bf16.mxu0 %v918
        %1103 = vmatpush2.bf16.msra.mxu0 %v917
        %1104 = vmatprep.subr.bf16.mxu0 %v914
        %1105 = vmatpush2.bf16.msra.mxu0 %v913
        %1106 = vmatprep.subr.bf16.mxu0 %v910
        %1107 = vmatpush2.bf16.msra.mxu0 %v909
        %1108 = vmatprep.mubr.bf16.mxu0 %v668
        %1109 = vmatmul.mubr.bf16.gmra.mxu0 %v667
        %v1110 = vpop.f32.mrf.mxu0
        %v1111 = vadd.f32 %v634, %v1110
        %v1112 = vpop.f32.mrf.mxu0
        %v1113 = vadd.f32 %v638, %v1112
        %v1114 = vpop.f32.mrf.mxu0
        %v1115 = vadd.f32 %v634, %v1114
        %v1116 = vpop.f32.mrf.mxu0
        %v1117 = vadd.f32 %v638, %v1116
        %1118 = vmatprep.mubr.bf16.mxu0 %v670
        %1119 = vmatmul.mubr.bf16.gmra.mxu0 %v669
        %v1120 = vpop.f32.mrf.mxu0
        %v1121 = vadd.f32 %v634, %v1120
        %v1122 = vpop.f32.mrf.mxu0
        %v1123 = vadd.f32 %v638, %v1122
        %v1124 = vpop.f32.mrf.mxu0
        %v1125 = vadd.f32 %v634, %v1124
        %v1126 = vpop.f32.mrf.mxu0
        %v1127 = vadd.f32 %v638, %v1126
        %1128 = vmatprep.mubr.bf16.mxu0 %v672
        %1129 = vmatmul.mubr.bf16.gmra.mxu0 %v671
        %v1130 = vpop.f32.mrf.mxu0
        %v1131 = vadd.f32 %v634, %v1130
        %v1132 = vpop.f32.mrf.mxu0
        %v1133 = vadd.f32 %v638, %v1132
        %v1134 = vpop.f32.mrf.mxu0
        %v1135 = vadd.f32 %v634, %v1134
        %v1136 = vpop.f32.mrf.mxu0
        %v1137 = vadd.f32 %v638, %v1136
        %1138 = vmatprep.mubr.bf16.mxu0 %v674
        %1139 = vmatmul.mubr.bf16.gmra.mxu0 %v673
        %v1140 = vpop.f32.mrf.mxu0
        %v1141 = vadd.f32 %v634, %v1140
        %v1142 = vpop.f32.mrf.mxu0
        %v1143 = vadd.f32 %v638, %v1142
        %v1144 = vpop.f32.mrf.mxu0
        %v1145 = vadd.f32 %v634, %v1144
        %v1146 = vpop.f32.mrf.mxu0
        %v1147 = vadd.f32 %v638, %v1146
        %1148 = vdwg.mxu0
        %v1149 = vmul.f32 %v1038, %v1038
        %v1150 = vmul.f32 %v1040, %v1040
        %v1151 = vmul.f32 %v1111, %v1111
        %v1152 = vmul.f32 %v1113, %v1113
        %v1153 = vmul.f32 %v1042, %v1042
        %v1154 = vmul.f32 %v1044, %v1044
        %v1155 = vmul.f32 %v1115, %v1115
        %v1156 = vmul.f32 %v1117, %v1117
        %v1157 = vmul.f32 %v1048, %v1048
        %v1158 = vmul.f32 %v1050, %v1050
        %v1159 = vmul.f32 %v1121, %v1121
        %v1160 = vmul.f32 %v1123, %v1123
        %v1161 = vmul.f32 %v1052, %v1052
        %v1162 = vmul.f32 %v1054, %v1054
        %v1163 = vmul.f32 %v1125, %v1125
        %v1164 = vmul.f32 %v1127, %v1127
        %v1165 = vmul.f32 %v1058, %v1058
        %v1166 = vmul.f32 %v1060, %v1060
        %v1167 = vmul.f32 %v1131, %v1131
        %v1168 = vmul.f32 %v1133, %v1133
        %v1169 = vmul.f32 %v1062, %v1062
        %v1170 = vmul.f32 %v1064, %v1064
        %v1171 = vmul.f32 %v1135, %v1135
        %v1172 = vmul.f32 %v1137, %v1137
        %v1173 = vmul.f32 %v1068, %v1068
        %v1174 = vmul.f32 %v1070, %v1070
        %v1175 = vmul.f32 %v1141, %v1141
        %v1176 = vmul.f32 %v1143, %v1143
        %v1177 = vmul.f32 %v1072, %v1072
        %v1178 = vmul.f32 %v1074, %v1074
        %v1179 = vmul.f32 %v1145, %v1145
        %v1180 = vmul.f32 %v1147, %v1147
        %v1181 = vmul.f32 %v1038, %v1149
        %v1182 = vmul.f32 %v1040, %v1150
        %v1183 = vmul.f32 %v1111, %v1151
        %v1184 = vmul.f32 %v1113, %v1152
        %v1185 = vmul.f32 %v1042, %v1153
        %v1186 = vmul.f32 %v1044, %v1154
        %v1187 = vmul.f32 %v1115, %v1155
        %v1188 = vmul.f32 %v1117, %v1156
        %v1189 = vmul.f32 %v1048, %v1157
        %v1190 = vmul.f32 %v1050, %v1158
        %v1191 = vmul.f32 %v1121, %v1159
        %v1192 = vmul.f32 %v1123, %v1160
        %v1193 = vmul.f32 %v1052, %v1161
        %v1194 = vmul.f32 %v1054, %v1162
        %v1195 = vmul.f32 %v1125, %v1163
        %v1196 = vmul.f32 %v1127, %v1164
        %v1197 = vmul.f32 %v1058, %v1165
        %v1198 = vmul.f32 %v1060, %v1166
        %v1199 = vmul.f32 %v1131, %v1167
        %v1200 = vmul.f32 %v1133, %v1168
        %v1201 = vmul.f32 %v1062, %v1169
        %v1202 = vmul.f32 %v1064, %v1170
        %v1203 = vmul.f32 %v1135, %v1171
        %v1204 = vmul.f32 %v1137, %v1172
        %v1205 = vmul.f32 %v1068, %v1173
        %v1206 = vmul.f32 %v1070, %v1174
        %v1207 = vmul.f32 %v1141, %v1175
        %v1208 = vmul.f32 %v1143, %v1176
        %v1209 = vmul.f32 %v1072, %v1177
        %v1210 = vmul.f32 %v1074, %v1178
        %v1211 = vmul.f32 %v1145, %v1179
        %v1212 = vmul.f32 %v1147, %v1180
        %v1213 = vmul.f32 %v1181, 0.044715
        %v1214 = vmul.f32 %v1182, 0.044715
        %v1215 = vmul.f32 %v1183, 0.044715
        %v1216 = vmul.f32 %v1184, 0.044715
        %v1217 = vmul.f32 %v1185, 0.044715
        %v1218 = vmul.f32 %v1186, 0.044715
        %v1219 = vmul.f32 %v1187, 0.044715
        %v1220 = vmul.f32 %v1188, 0.044715
        %v1221 = vmul.f32 %v1189, 0.044715
        %v1222 = vmul.f32 %v1190, 0.044715
        %v1223 = vmul.f32 %v1191, 0.044715
        %v1224 = vmul.f32 %v1192, 0.044715
        %v1225 = vmul.f32 %v1193, 0.044715
        %v1226 = vmul.f32 %v1194, 0.044715
        %v1227 = vmul.f32 %v1195, 0.044715
        %v1228 = vmul.f32 %v1196, 0.044715
        %v1229 = vmul.f32 %v1197, 0.044715
        %v1230 = vmul.f32 %v1198, 0.044715
        %v1231 = vmul.f32 %v1199, 0.044715
        %v1232 = vmul.f32 %v1200, 0.044715
        %v1233 = vmul.f32 %v1201, 0.044715
        %v1234 = vmul.f32 %v1202, 0.044715
        %v1235 = vmul.f32 %v1203, 0.044715
        %v1236 = vmul.f32 %v1204, 0.044715
        %v1237 = vmul.f32 %v1205, 0.044715
        %v1238 = vmul.f32 %v1206, 0.044715
        %v1239 = vmul.f32 %v1207, 0.044715
        %v1240 = vmul.f32 %v1208, 0.044715
        %v1241 = vmul.f32 %v1209, 0.044715
        %v1242 = vmul.f32 %v1210, 0.044715
        %v1243 = vmul.f32 %v1211, 0.044715
        %v1244 = vmul.f32 %v1212, 0.044715
        %v1245 = vadd.f32 %v1038, %v1213
        %v1246 = vadd.f32 %v1040, %v1214
        %v1247 = vadd.f32 %v1111, %v1215
        %v1248 = vadd.f32 %v1113, %v1216
        %v1249 = vadd.f32 %v1042, %v1217
        %v1250 = vadd.f32 %v1044, %v1218
        %v1251 = vadd.f32 %v1115, %v1219
        %v1252 = vadd.f32 %v1117, %v1220
        %v1253 = vadd.f32 %v1048, %v1221
        %v1254 = vadd.f32 %v1050, %v1222
        %v1255 = vadd.f32 %v1121, %v1223
        %v1256 = vadd.f32 %v1123, %v1224
        %v1257 = vadd.f32 %v1052, %v1225
        %v1258 = vadd.f32 %v1054, %v1226
        %v1259 = vadd.f32 %v1125, %v1227
        %v1260 = vadd.f32 %v1127, %v1228
        %v1261 = vadd.f32 %v1058, %v1229
        %v1262 = vadd.f32 %v1060, %v1230
        %v1263 = vadd.f32 %v1131, %v1231
        %v1264 = vadd.f32 %v1133, %v1232
        %v1265 = vadd.f32 %v1062, %v1233
        %v1266 = vadd.f32 %v1064, %v1234
        %v1267 = vadd.f32 %v1135, %v1235
        %v1268 = vadd.f32 %v1137, %v1236
        %v1269 = vadd.f32 %v1068, %v1237
        %v1270 = vadd.f32 %v1070, %v1238
        %v1271 = vadd.f32 %v1141, %v1239
        %v1272 = vadd.f32 %v1143, %v1240
        %v1273 = vadd.f32 %v1072, %v1241
        %v1274 = vadd.f32 %v1074, %v1242
        %v1275 = vadd.f32 %v1145, %v1243
        %v1276 = vadd.f32 %v1147, %v1244
        %v1277 = vmul.f32 %v1245, 0.7978846
        %v1278 = vmul.f32 %v1246, 0.7978846
        %v1279 = vmul.f32 %v1247, 0.7978846
        %v1280 = vmul.f32 %v1248, 0.7978846
        %v1281 = vmul.f32 %v1249, 0.7978846
        %v1282 = vmul.f32 %v1250, 0.7978846
        %v1283 = vmul.f32 %v1251, 0.7978846
        %v1284 = vmul.f32 %v1252, 0.7978846
        %v1285 = vmul.f32 %v1253, 0.7978846
        %v1286 = vmul.f32 %v1254, 0.7978846
        %v1287 = vmul.f32 %v1255, 0.7978846
        %v1288 = vmul.f32 %v1256, 0.7978846
        %v1289 = vmul.f32 %v1257, 0.7978846
        %v1290 = vmul.f32 %v1258, 0.7978846
        %v1291 = vmul.f32 %v1259, 0.7978846
        %v1292 = vmul.f32 %v1260, 0.7978846
        %v1293 = vmul.f32 %v1261, 0.7978846
        %v1294 = vmul.f32 %v1262, 0.7978846
        %v1295 = vmul.f32 %v1263, 0.7978846
        %v1296 = vmul.f32 %v1264, 0.7978846
        %v1297 = vmul.f32 %v1265, 0.7978846
        %v1298 = vmul.f32 %v1266, 0.7978846
        %v1299 = vmul.f32 %v1267, 0.7978846
        %v1300 = vmul.f32 %v1268, 0.7978846
        %v1301 = vmul.f32 %v1269, 0.7978846
        %v1302 = vmul.f32 %v1270, 0.7978846
        %v1303 = vmul.f32 %v1271, 0.7978846
        %v1304 = vmul.f32 %v1272, 0.7978846
        %v1305 = vmul.f32 %v1273, 0.7978846
        %v1306 = vmul.f32 %v1274, 0.7978846
        %v1307 = vmul.f32 %v1275, 0.7978846
        %v1308 = vmul.f32 %v1276, 0.7978846
        %v1309 = vtanh.pop %v1277
        %v1310 = vtanh.pop %v1278
        %v1311 = vtanh.pop %v1279
        %v1312 = vtanh.pop %v1280
        %v1313 = vtanh.pop %v1281
        %v1314 = vtanh.pop %v1282
        %v1315 = vtanh.pop %v1283
        %v1316 = vtanh.pop %v1284
        %v1317 = vtanh.pop %v1285
        %v1318 = vtanh.pop %v1286
        %v1319 = vtanh.pop %v1287
        %v1320 = vtanh.pop %v1288
        %v1321 = vtanh.pop %v1289
        %v1322 = vtanh.pop %v1290
        %v1323 = vtanh.pop %v1291
        %v1324 = vtanh.pop %v1292
        %v1325 = vtanh.pop %v1293
        %v1326 = vtanh.pop %v1294
        %v1327 = vtanh.pop %v1295
        %v1328 = vtanh.pop %v1296
        %v1329 = vtanh.pop %v1297
        %v1330 = vtanh.pop %v1298
        %v1331 = vtanh.pop %v1299
        %v1332 = vtanh.pop %v1300
        %v1333 = vtanh.pop %v1301
        %v1334 = vtanh.pop %v1302
        %v1335 = vtanh.pop %v1303
        %v1336 = vtanh.pop %v1304
        %v1337 = vtanh.pop %v1305
        %v1338 = vtanh.pop %v1306
        %v1339 = vtanh.pop %v1307
        %v1340 = vtanh.pop %v1308
        %v1341 = vadd.f32 %v1309, 1.0
        %v1342 = vadd.f32 %v1310, 1.0
        %v1343 = vadd.f32 %v1311, 1.0
        %v1344 = vadd.f32 %v1312, 1.0
        %v1345 = vadd.f32 %v1313, 1.0
        %v1346 = vadd.f32 %v1314, 1.0
        %v1347 = vadd.f32 %v1315, 1.0
        %v1348 = vadd.f32 %v1316, 1.0
        %v1349 = vadd.f32 %v1317, 1.0
        %v1350 = vadd.f32 %v1318, 1.0
        %v1351 = vadd.f32 %v1319, 1.0
        %v1352 = vadd.f32 %v1320, 1.0
        %v1353 = vadd.f32 %v1321, 1.0
        %v1354 = vadd.f32 %v1322, 1.0
        %v1355 = vadd.f32 %v1323, 1.0
        %v1356 = vadd.f32 %v1324, 1.0
        %v1357 = vadd.f32 %v1325, 1.0
        %v1358 = vadd.f32 %v1326, 1.0
        %v1359 = vadd.f32 %v1327, 1.0
        %v1360 = vadd.f32 %v1328, 1.0
        %v1361 = vadd.f32 %v1329, 1.0
        %v1362 = vadd.f32 %v1330, 1.0
        %v1363 = vadd.f32 %v1331, 1.0
        %v1364 = vadd.f32 %v1332, 1.0
        %v1365 = vadd.f32 %v1333, 1.0
        %v1366 = vadd.f32 %v1334, 1.0
        %v1367 = vadd.f32 %v1335, 1.0
        %v1368 = vadd.f32 %v1336, 1.0
        %v1369 = vadd.f32 %v1337, 1.0
        %v1370 = vadd.f32 %v1338, 1.0
        %v1371 = vadd.f32 %v1339, 1.0
        %v1372 = vadd.f32 %v1340, 1.0
        %v1373 = vmul.f32 %v1341, 0.5
        %v1374 = vmul.f32 %v1342, 0.5
        %v1375 = vmul.f32 %v1343, 0.5
        %v1376 = vmul.f32 %v1344, 0.5
        %v1377 = vmul.f32 %v1345, 0.5
        %v1378 = vmul.f32 %v1346, 0.5
        %v1379 = vmul.f32 %v1347, 0.5
        %v1380 = vmul.f32 %v1348, 0.5
        %v1381 = vmul.f32 %v1349, 0.5
        %v1382 = vmul.f32 %v1350, 0.5
        %v1383 = vmul.f32 %v1351, 0.5
        %v1384 = vmul.f32 %v1352, 0.5
        %v1385 = vmul.f32 %v1353, 0.5
        %v1386 = vmul.f32 %v1354, 0.5
        %v1387 = vmul.f32 %v1355, 0.5
        %v1388 = vmul.f32 %v1356, 0.5
        %v1389 = vmul.f32 %v1357, 0.5
        %v1390 = vmul.f32 %v1358, 0.5
        %v1391 = vmul.f32 %v1359, 0.5
        %v1392 = vmul.f32 %v1360, 0.5
        %v1393 = vmul.f32 %v1361, 0.5
        %v1394 = vmul.f32 %v1362, 0.5
        %v1395 = vmul.f32 %v1363, 0.5
        %v1396 = vmul.f32 %v1364, 0.5
        %v1397 = vmul.f32 %v1365, 0.5
        %v1398 = vmul.f32 %v1366, 0.5
        %v1399 = vmul.f32 %v1367, 0.5
        %v1400 = vmul.f32 %v1368, 0.5
        %v1401 = vmul.f32 %v1369, 0.5
        %v1402 = vmul.f32 %v1370, 0.5
        %v1403 = vmul.f32 %v1371, 0.5
        %v1404 = vmul.f32 %v1372, 0.5
        %v1405 = vmul.f32 %v1038, %v1373
        %v1406 = vmul.f32 %v1040, %v1374
        %v1407 = vmul.f32 %v1111, %v1375
        %v1408 = vmul.f32 %v1113, %v1376
        %v1409 = vmul.f32 %v1042, %v1377
        %v1410 = vmul.f32 %v1044, %v1378
        %v1411 = vmul.f32 %v1115, %v1379
        %v1412 = vmul.f32 %v1117, %v1380
        %v1413 = vmul.f32 %v1048, %v1381
        %v1414 = vmul.f32 %v1050, %v1382
        %v1415 = vmul.f32 %v1121, %v1383
        %v1416 = vmul.f32 %v1123, %v1384
        %v1417 = vmul.f32 %v1052, %v1385
        %v1418 = vmul.f32 %v1054, %v1386
        %v1419 = vmul.f32 %v1125, %v1387
        %v1420 = vmul.f32 %v1127, %v1388
        %v1421 = vmul.f32 %v1058, %v1389
        %v1422 = vmul.f32 %v1060, %v1390
        %v1423 = vmul.f32 %v1131, %v1391
        %v1424 = vmul.f32 %v1133, %v1392
        %v1425 = vmul.f32 %v1062, %v1393
        %v1426 = vmul.f32 %v1064, %v1394
        %v1427 = vmul.f32 %v1135, %v1395
        %v1428 = vmul.f32 %v1137, %v1396
        %v1429 = vmul.f32 %v1068, %v1397
        %v1430 = vmul.f32 %v1070, %v1398
        %v1431 = vmul.f32 %v1141, %v1399
        %v1432 = vmul.f32 %v1143, %v1400
        %v1433 = vmul.f32 %v1072, %v1401
        %v1434 = vmul.f32 %v1074, %v1402
        %v1435 = vmul.f32 %v1145, %v1403
        %v1436 = vmul.f32 %v1147, %v1404
        %v1437 = vld [vmem:[#allocation3] sm:$0xff]
        %v1438 = vld [vmem:[#allocation3 + $0x8] sm:$0xff]
        %v1439 = vld [vmem:[#allocation3 + $0x10] sm:$0xff]
        %v1440 = vld [vmem:[#allocation3 + $0x18] sm:$0xff]
        %v1441 = vld [vmem:[#allocation3 + $0x20] sm:$0xff]
        %v1442 = vld [vmem:[#allocation3 + $0x28] sm:$0xff]
        %v1443 = vld [vmem:[#allocation3 + $0x30] sm:$0xff]
        %v1444 = vld [vmem:[#allocation3 + $0x38] sm:$0xff]
        %v1445 = vld [vmem:[#allocation3 + $0x40] sm:$0xff]
        %v1446 = vld [vmem:[#allocation3 + $0x48] sm:$0xff]
        %v1447 = vld [vmem:[#allocation3 + $0x50] sm:$0xff]
        %v1448 = vld [vmem:[#allocation3 + $0x58] sm:$0xff]
        %v1449 = vld [vmem:[#allocation3 + $0x60] sm:$0xff]
        %v1450 = vld [vmem:[#allocation3 + $0x68] sm:$0xff]
        %v1451 = vld [vmem:[#allocation3 + $0x70] sm:$0xff]
        %v1452 = vld [vmem:[#allocation3 + $0x78] sm:$0xff]
        %v1453 = vpack.c.bf16 %v1409, %v1405
        %v1454 = vpack.c.bf16 %v1410, %v1406
        %v1455 = vpack.c.bf16 %v1411, %v1407
        %v1456 = vpack.c.bf16 %v1412, %v1408
        %v1457 = vpack.c.bf16 %v1417, %v1413
        %v1458 = vpack.c.bf16 %v1418, %v1414
        %v1459 = vpack.c.bf16 %v1419, %v1415
        %v1460 = vpack.c.bf16 %v1420, %v1416
        %v1461 = vpack.c.bf16 %v1425, %v1421
        %v1462 = vpack.c.bf16 %v1426, %v1422
        %v1463 = vpack.c.bf16 %v1427, %v1423
        %v1464 = vpack.c.bf16 %v1428, %v1424
        %v1465 = vpack.c.bf16 %v1433, %v1429
        %v1466 = vpack.c.bf16 %v1434, %v1430
        %v1467 = vpack.c.bf16 %v1435, %v1431
        %v1468 = vpack.c.bf16 %v1436, %v1432
        %v1469 = vld [vmem:[#allocation10] sm:$0xff]
        %v1470 = vld [vmem:[#allocation10 + $0x8] sm:$0xff]
        %v1471 = vld [vmem:[#allocation10 + $0x10] sm:$0xff]
        %v1472 = vld [vmem:[#allocation10 + $0x18] sm:$0xff]
        %v1473 = vld [vmem:[#allocation10 + $0x20] sm:$0xff]
        %v1474 = vld [vmem:[#allocation10 + $0x28] sm:$0xff]
        %v1475 = vld [vmem:[#allocation10 + $0x30] sm:$0xff]
        %v1476 = vld [vmem:[#allocation10 + $0x38] sm:$0xff]
        %v1477 = vld [vmem:[#allocation10 + $0x40] sm:$0xff]
        %v1478 = vld [vmem:[#allocation10 + $0x48] sm:$0xff]
        %v1479 = vld [vmem:[#allocation10 + $0x50] sm:$0xff]
        %v1480 = vld [vmem:[#allocation10 + $0x58] sm:$0xff]
        %v1481 = vld [vmem:[#allocation10 + $0x60] sm:$0xff]
        %v1482 = vld [vmem:[#allocation10 + $0x68] sm:$0xff]
        %v1483 = vld [vmem:[#allocation10 + $0x70] sm:$0xff]
        %v1484 = vld [vmem:[#allocation10 + $0x78] sm:$0xff]
        %v1485 = vld [vmem:[#allocation10 + $0x80] sm:$0xff]
        %v1486 = vld [vmem:[#allocation10 + $0x88] sm:$0xff]
        %v1487 = vld [vmem:[#allocation10 + $0x90] sm:$0xff]
        %v1488 = vld [vmem:[#allocation10 + $0x98] sm:$0xff]
        %v1489 = vld [vmem:[#allocation10 + $0xa0] sm:$0xff]
        %v1490 = vld [vmem:[#allocation10 + $0xa8] sm:$0xff]
        %v1491 = vld [vmem:[#allocation10 + $0xb0] sm:$0xff]
        %v1492 = vld [vmem:[#allocation10 + $0xb8] sm:$0xff]
        %v1493 = vld [vmem:[#allocation10 + $0xc0] sm:$0xff]
        %v1494 = vld [vmem:[#allocation10 + $0xc8] sm:$0xff]
        %v1495 = vld [vmem:[#allocation10 + $0xd0] sm:$0xff]
        %v1496 = vld [vmem:[#allocation10 + $0xd8] sm:$0xff]
        %v1497 = vld [vmem:[#allocation10 + $0xe0] sm:$0xff]
        %v1498 = vld [vmem:[#allocation10 + $0xe8] sm:$0xff]
        %v1499 = vld [vmem:[#allocation10 + $0xf0] sm:$0xff]
        %v1500 = vld [vmem:[#allocation10 + $0xf8] sm:$0xff]
        %v1501 = vld [vmem:[#allocation10 + $0x100] sm:$0xff]
        %v1502 = vld [vmem:[#allocation10 + $0x108] sm:$0xff]
        %v1503 = vld [vmem:[#allocation10 + $0x110] sm:$0xff]
        %v1504 = vld [vmem:[#allocation10 + $0x118] sm:$0xff]
        %v1505 = vld [vmem:[#allocation10 + $0x120] sm:$0xff]
        %v1506 = vld [vmem:[#allocation10 + $0x128] sm:$0xff]
        %v1507 = vld [vmem:[#allocation10 + $0x130] sm:$0xff]
        %v1508 = vld [vmem:[#allocation10 + $0x138] sm:$0xff]
        %v1509 = vld [vmem:[#allocation10 + $0x140] sm:$0xff]
        %v1510 = vld [vmem:[#allocation10 + $0x148] sm:$0xff]
        %v1511 = vld [vmem:[#allocation10 + $0x150] sm:$0xff]
        %v1512 = vld [vmem:[#allocation10 + $0x158] sm:$0xff]
        %v1513 = vld [vmem:[#allocation10 + $0x160] sm:$0xff]
        %v1514 = vld [vmem:[#allocation10 + $0x168] sm:$0xff]
        %v1515 = vld [vmem:[#allocation10 + $0x170] sm:$0xff]
        %v1516 = vld [vmem:[#allocation10 + $0x178] sm:$0xff]
        %v1517 = vld [vmem:[#allocation10 + $0x180] sm:$0xff]
        %v1518 = vld [vmem:[#allocation10 + $0x188] sm:$0xff]
        %v1519 = vld [vmem:[#allocation10 + $0x190] sm:$0xff]
        %v1520 = vld [vmem:[#allocation10 + $0x198] sm:$0xff]
        %v1521 = vld [vmem:[#allocation10 + $0x1a0] sm:$0xff]
        %v1522 = vld [vmem:[#allocation10 + $0x1a8] sm:$0xff]
        %v1523 = vld [vmem:[#allocation10 + $0x1b0] sm:$0xff]
        %v1524 = vld [vmem:[#allocation10 + $0x1b8] sm:$0xff]
        %v1525 = vld [vmem:[#allocation10 + $0x1c0] sm:$0xff]
        %v1526 = vld [vmem:[#allocation10 + $0x1c8] sm:$0xff]
        %v1527 = vld [vmem:[#allocation10 + $0x1d0] sm:$0xff]
        %v1528 = vld [vmem:[#allocation10 + $0x1d8] sm:$0xff]
        %v1529 = vld [vmem:[#allocation10 + $0x1e0] sm:$0xff]
        %v1530 = vld [vmem:[#allocation10 + $0x1e8] sm:$0xff]
        %v1531 = vld [vmem:[#allocation10 + $0x1f0] sm:$0xff]
        %v1532 = vld [vmem:[#allocation10 + $0x1f8] sm:$0xff]
        %v1597 = vunpack.c.l.b16 %v1469
        %v1598 = vunpack.c.h.b16 %v1469
        %v1599 = vunpack.c.l.b16 %v1470
        %v1600 = vunpack.c.h.b16 %v1470
        %v1601 = vunpack.c.l.b16 %v1471
        %v1602 = vunpack.c.h.b16 %v1471
        %v1603 = vunpack.c.l.b16 %v1472
        %v1604 = vunpack.c.h.b16 %v1472
        %v1605 = vunpack.c.l.b16 %v1473
        %v1606 = vunpack.c.h.b16 %v1473
        %v1607 = vunpack.c.l.b16 %v1474
        %v1608 = vunpack.c.h.b16 %v1474
        %v1609 = vunpack.c.l.b16 %v1475
        %v1610 = vunpack.c.h.b16 %v1475
        %v1611 = vunpack.c.l.b16 %v1476
        %v1612 = vunpack.c.h.b16 %v1476
        %v1613 = vunpack.c.l.b16 %v1477
        %v1614 = vunpack.c.h.b16 %v1477
        %v1615 = vunpack.c.l.b16 %v1478
        %v1616 = vunpack.c.h.b16 %v1478
        %v1617 = vunpack.c.l.b16 %v1479
        %v1618 = vunpack.c.h.b16 %v1479
        %v1619 = vunpack.c.l.b16 %v1480
        %v1620 = vunpack.c.h.b16 %v1480
        %v1621 = vunpack.c.l.b16 %v1481
        %v1622 = vunpack.c.h.b16 %v1481
        %v1623 = vunpack.c.l.b16 %v1482
        %v1624 = vunpack.c.h.b16 %v1482
        %v1625 = vunpack.c.l.b16 %v1483
        %v1626 = vunpack.c.h.b16 %v1483
        %v1627 = vunpack.c.l.b16 %v1484
        %v1628 = vunpack.c.h.b16 %v1484
        %v1629 = vunpack.c.l.b16 %v1485
        %v1630 = vunpack.c.h.b16 %v1485
        %v1631 = vunpack.c.l.b16 %v1486
        %v1632 = vunpack.c.h.b16 %v1486
        %v1633 = vunpack.c.l.b16 %v1487
        %v1634 = vunpack.c.h.b16 %v1487
        %v1635 = vunpack.c.l.b16 %v1488
        %v1636 = vunpack.c.h.b16 %v1488
        %v1637 = vunpack.c.l.b16 %v1489
        %v1638 = vunpack.c.h.b16 %v1489
        %v1639 = vunpack.c.l.b16 %v1490
        %v1640 = vunpack.c.h.b16 %v1490
        %v1641 = vunpack.c.l.b16 %v1491
        %v1642 = vunpack.c.h.b16 %v1491
        %v1643 = vunpack.c.l.b16 %v1492
        %v1644 = vunpack.c.h.b16 %v1492
        %v1645 = vunpack.c.l.b16 %v1493
        %v1646 = vunpack.c.h.b16 %v1493
        %v1647 = vunpack.c.l.b16 %v1494
        %v1648 = vunpack.c.h.b16 %v1494
        %v1649 = vunpack.c.l.b16 %v1495
        %v1650 = vunpack.c.h.b16 %v1495
        %v1651 = vunpack.c.l.b16 %v1496
        %v1652 = vunpack.c.h.b16 %v1496
        %v1653 = vunpack.c.l.b16 %v1497
        %v1654 = vunpack.c.h.b16 %v1497
        %v1655 = vunpack.c.l.b16 %v1498
        %v1656 = vunpack.c.h.b16 %v1498
        %v1657 = vunpack.c.l.b16 %v1499
        %v1658 = vunpack.c.h.b16 %v1499
        %v1659 = vunpack.c.l.b16 %v1500
        %v1660 = vunpack.c.h.b16 %v1500
        %v1661 = vunpack.c.l.b16 %v1501
        %v1662 = vunpack.c.h.b16 %v1501
        %v1663 = vunpack.c.l.b16 %v1502
        %v1664 = vunpack.c.h.b16 %v1502
        %v1665 = vunpack.c.l.b16 %v1503
        %v1666 = vunpack.c.h.b16 %v1503
        %v1667 = vunpack.c.l.b16 %v1504
        %v1668 = vunpack.c.h.b16 %v1504
        %v1669 = vunpack.c.l.b16 %v1505
        %v1670 = vunpack.c.h.b16 %v1505
        %v1671 = vunpack.c.l.b16 %v1506
        %v1672 = vunpack.c.h.b16 %v1506
        %v1673 = vunpack.c.l.b16 %v1507
        %v1674 = vunpack.c.h.b16 %v1507
        %v1675 = vunpack.c.l.b16 %v1508
        %v1676 = vunpack.c.h.b16 %v1508
        %v1677 = vunpack.c.l.b16 %v1509
        %v1678 = vunpack.c.h.b16 %v1509
        %v1679 = vunpack.c.l.b16 %v1510
        %v1680 = vunpack.c.h.b16 %v1510
        %v1681 = vunpack.c.l.b16 %v1511
        %v1682 = vunpack.c.h.b16 %v1511
        %v1683 = vunpack.c.l.b16 %v1512
        %v1684 = vunpack.c.h.b16 %v1512
        %v1685 = vunpack.c.l.b16 %v1513
        %v1686 = vunpack.c.h.b16 %v1513
        %v1687 = vunpack.c.l.b16 %v1514
        %v1688 = vunpack.c.h.b16 %v1514
        %v1689 = vunpack.c.l.b16 %v1515
        %v1690 = vunpack.c.h.b16 %v1515
        %v1691 = vunpack.c.l.b16 %v1516
        %v1692 = vunpack.c.h.b16 %v1516
        %v1693 = vunpack.c.l.b16 %v1517
        %v1694 = vunpack.c.h.b16 %v1517
        %v1695 = vunpack.c.l.b16 %v1518
        %v1696 = vunpack.c.h.b16 %v1518
        %v1697 = vunpack.c.l.b16 %v1519
        %v1698 = vunpack.c.h.b16 %v1519
        %v1699 = vunpack.c.l.b16 %v1520
        %v1700 = vunpack.c.h.b16 %v1520
        %v1701 = vunpack.c.l.b16 %v1521
        %v1702 = vunpack.c.h.b16 %v1521
        %v1703 = vunpack.c.l.b16 %v1522
        %v1704 = vunpack.c.h.b16 %v1522
        %v1705 = vunpack.c.l.b16 %v1523
        %v1706 = vunpack.c.h.b16 %v1523
        %v1707 = vunpack.c.l.b16 %v1524
        %v1708 = vunpack.c.h.b16 %v1524
        %v1709 = vunpack.c.l.b16 %v1525
        %v1710 = vunpack.c.h.b16 %v1525
        %v1711 = vunpack.c.l.b16 %v1526
        %v1712 = vunpack.c.h.b16 %v1526
        %v1713 = vunpack.c.l.b16 %v1527
        %v1714 = vunpack.c.h.b16 %v1527
        %v1715 = vunpack.c.l.b16 %v1528
        %v1716 = vunpack.c.h.b16 %v1528
        %v1717 = vunpack.c.l.b16 %v1529
        %v1718 = vunpack.c.h.b16 %v1529
        %v1719 = vunpack.c.l.b16 %v1530
        %v1720 = vunpack.c.h.b16 %v1530
        %v1721 = vunpack.c.l.b16 %v1531
        %v1722 = vunpack.c.h.b16 %v1531
        %v1723 = vunpack.c.l.b16 %v1532
        %v1724 = vunpack.c.h.b16 %v1532
        %v1725 = vpack.c.b16 %v1599, %v1597
        %v1726 = vpack.c.b16 %v1600, %v1598
        %v1727 = vpack.c.b16 %v1603, %v1601
        %v1728 = vpack.c.b16 %v1604, %v1602
        %v1729 = vpack.c.b16 %v1607, %v1605
        %v1730 = vpack.c.b16 %v1608, %v1606
        %v1731 = vpack.c.b16 %v1611, %v1609
        %v1732 = vpack.c.b16 %v1612, %v1610
        %v1733 = vpack.c.b16 %v1615, %v1613
        %v1734 = vpack.c.b16 %v1616, %v1614
        %v1735 = vpack.c.b16 %v1619, %v1617
        %v1736 = vpack.c.b16 %v1620, %v1618
        %v1737 = vpack.c.b16 %v1623, %v1621
        %v1738 = vpack.c.b16 %v1624, %v1622
        %v1739 = vpack.c.b16 %v1627, %v1625
        %v1740 = vpack.c.b16 %v1628, %v1626
        %v1741 = vpack.c.b16 %v1631, %v1629
        %v1742 = vpack.c.b16 %v1632, %v1630
        %v1743 = vpack.c.b16 %v1635, %v1633
        %v1744 = vpack.c.b16 %v1636, %v1634
        %v1745 = vpack.c.b16 %v1639, %v1637
        %v1746 = vpack.c.b16 %v1640, %v1638
        %v1747 = vpack.c.b16 %v1643, %v1641
        %v1748 = vpack.c.b16 %v1644, %v1642
        %v1749 = vpack.c.b16 %v1647, %v1645
        %v1750 = vpack.c.b16 %v1648, %v1646
        %v1751 = vpack.c.b16 %v1651, %v1649
        %v1752 = vpack.c.b16 %v1652, %v1650
        %v1753 = vpack.c.b16 %v1655, %v1653
        %v1754 = vpack.c.b16 %v1656, %v1654
        %v1755 = vpack.c.b16 %v1659, %v1657
        %v1756 = vpack.c.b16 %v1660, %v1658
        %v1757 = vpack.c.b16 %v1663, %v1661
        %v1758 = vpack.c.b16 %v1664, %v1662
        %v1759 = vpack.c.b16 %v1667, %v1665
        %v1760 = vpack.c.b16 %v1668, %v1666
        %v1761 = vpack.c.b16 %v1671, %v1669
        %v1762 = vpack.c.b16 %v1672, %v1670
        %v1763 = vpack.c.b16 %v1675, %v1673
        %v1764 = vpack.c.b16 %v1676, %v1674
        %v1765 = vpack.c.b16 %v1679, %v1677
        %v1766 = vpack.c.b16 %v1680, %v1678
        %v1767 = vpack.c.b16 %v1683, %v1681
        %v1768 = vpack.c.b16 %v1684, %v1682
        %v1769 = vpack.c.b16 %v1687, %v1685
        %v1770 = vpack.c.b16 %v1688, %v1686
        %v1771 = vpack.c.b16 %v1691, %v1689
        %v1772 = vpack.c.b16 %v1692, %v1690
        %v1773 = vpack.c.b16 %v1695, %v1693
        %v1774 = vpack.c.b16 %v1696, %v1694
        %v1775 = vpack.c.b16 %v1699, %v1697
        %v1776 = vpack.c.b16 %v1700, %v1698
        %v1777 = vpack.c.b16 %v1703, %v1701
        %v1778 = vpack.c.b16 %v1704, %v1702
        %v1779 = vpack.c.b16 %v1707, %v1705
        %v1780 = vpack.c.b16 %v1708, %v1706
        %v1781 = vpack.c.b16 %v1711, %v1709
        %v1782 = vpack.c.b16 %v1712, %v1710
        %v1783 = vpack.c.b16 %v1715, %v1713
        %v1784 = vpack.c.b16 %v1716, %v1714
        %v1785 = vpack.c.b16 %v1719, %v1717
        %v1786 = vpack.c.b16 %v1720, %v1718
        %v1787 = vpack.c.b16 %v1723, %v1721
        %v1788 = vpack.c.b16 %v1724, %v1722
        %1853 = vmatprep.subr.bf16.mxu0 %v1740
        %1854 = vmatpush1.bf16.msra.mxu0 %v1739
        %1855 = vmatprep.subr.bf16.mxu0 %v1738
        %1856 = vmatpush1.bf16.msra.mxu0 %v1737
        %1857 = vmatprep.subr.bf16.mxu0 %v1736
        %1858 = vmatpush1.bf16.msra.mxu0 %v1735
        %1859 = vmatprep.subr.bf16.mxu0 %v1734
        %1860 = vmatpush1.bf16.msra.mxu0 %v1733
        %1861 = vmatprep.subr.bf16.mxu0 %v1732
        %1862 = vmatpush1.bf16.msra.mxu0 %v1731
        %1863 = vmatprep.subr.bf16.mxu0 %v1730
        %1864 = vmatpush1.bf16.msra.mxu0 %v1729
        %1865 = vmatprep.subr.bf16.mxu0 %v1728
        %1866 = vmatpush1.bf16.msra.mxu0 %v1727
        %1867 = vmatprep.subr.bf16.mxu0 %v1726
        %1868 = vmatpush1.bf16.msra.mxu0 %v1725
        %1869 = vmatprep.subr.bf16.mxu0 %v1756
        %1870 = vmatpush2.bf16.msra.mxu0 %v1755
        %1871 = vmatprep.subr.bf16.mxu0 %v1754
        %1872 = vmatpush2.bf16.msra.mxu0 %v1753
        %1873 = vmatprep.subr.bf16.mxu0 %v1752
        %1874 = vmatpush2.bf16.msra.mxu0 %v1751
        %1875 = vmatprep.subr.bf16.mxu0 %v1750
        %1876 = vmatpush2.bf16.msra.mxu0 %v1749
        %1877 = vmatprep.subr.bf16.mxu0 %v1748
        %1878 = vmatpush2.bf16.msra.mxu0 %v1747
        %1879 = vmatprep.subr.bf16.mxu0 %v1746
        %1880 = vmatpush2.bf16.msra.mxu0 %v1745
        %1881 = vmatprep.subr.bf16.mxu0 %v1744
        %1882 = vmatpush2.bf16.msra.mxu0 %v1743
        %1883 = vmatprep.subr.bf16.mxu0 %v1742
        %1884 = vmatpush2.bf16.msra.mxu0 %v1741
        %1885 = vmatprep.mubr.bf16.mxu0 %v1454
        %1886 = vmatmul.mubr.bf16.gmra.mxu0 %v1453
        %v1887 = vpop.f32.mrf.mxu0
        %v1888 = vadd.f32 0.0, %v1887
        %v1889 = vpop.f32.mrf.mxu0
        %v1890 = vadd.f32 0.0, %v1889
        %v1891 = vpop.f32.mrf.mxu0
        %v1892 = vadd.f32 0.0, %v1891
        %v1893 = vpop.f32.mrf.mxu0
        %v1894 = vadd.f32 0.0, %v1893
        %1895 = vmatprep.mubr.bf16.mxu0 %v1458
        %1896 = vmatmul.mubr.bf16.gmra.mxu0 %v1457
        %v1897 = vpop.f32.mrf.mxu0
        %v1898 = vadd.f32 0.0, %v1897
        %v1899 = vpop.f32.mrf.mxu0
        %v1900 = vadd.f32 0.0, %v1899
        %v1901 = vpop.f32.mrf.mxu0
        %v1902 = vadd.f32 0.0, %v1901
        %v1903 = vpop.f32.mrf.mxu0
        %v1904 = vadd.f32 0.0, %v1903
        %1905 = vmatprep.mubr.bf16.mxu0 %v1462
        %1906 = vmatmul.mubr.bf16.gmra.mxu0 %v1461
        %v1907 = vpop.f32.mrf.mxu0
        %v1908 = vadd.f32 0.0, %v1907
        %v1909 = vpop.f32.mrf.mxu0
        %v1910 = vadd.f32 0.0, %v1909
        %v1911 = vpop.f32.mrf.mxu0
        %v1912 = vadd.f32 0.0, %v1911
        %v1913 = vpop.f32.mrf.mxu0
        %v1914 = vadd.f32 0.0, %v1913
        %1915 = vmatprep.mubr.bf16.mxu0 %v1466
        %1916 = vmatmul.mubr.bf16.gmra.mxu0 %v1465
        %v1917 = vpop.f32.mrf.mxu0
        %v1918 = vadd.f32 0.0, %v1917
        %v1919 = vpop.f32.mrf.mxu0
        %v1920 = vadd.f32 0.0, %v1919
        %v1921 = vpop.f32.mrf.mxu0
        %v1922 = vadd.f32 0.0, %v1921
        %v1923 = vpop.f32.mrf.mxu0
        %v1924 = vadd.f32 0.0, %v1923
        %1925 = vdwg.mxu0
        %1926 = vmatprep.subr.bf16.mxu0 %v1772
        %1927 = vmatpush1.bf16.msra.mxu0 %v1771
        %1928 = vmatprep.subr.bf16.mxu0 %v1770
        %1929 = vmatpush1.bf16.msra.mxu0 %v1769
        %1930 = vmatprep.subr.bf16.mxu0 %v1768
        %1931 = vmatpush1.bf16.msra.mxu0 %v1767
        %1932 = vmatprep.subr.bf16.mxu0 %v1766
        %1933 = vmatpush1.bf16.msra.mxu0 %v1765
        %1934 = vmatprep.subr.bf16.mxu0 %v1764
        %1935 = vmatpush1.bf16.msra.mxu0 %v1763
        %1936 = vmatprep.subr.bf16.mxu0 %v1762
        %1937 = vmatpush1.bf16.msra.mxu0 %v1761
        %1938 = vmatprep.subr.bf16.mxu0 %v1760
        %1939 = vmatpush1.bf16.msra.mxu0 %v1759
        %1940 = vmatprep.subr.bf16.mxu0 %v1758
        %1941 = vmatpush1.bf16.msra.mxu0 %v1757
        %1942 = vmatprep.subr.bf16.mxu0 %v1788
        %1943 = vmatpush2.bf16.msra.mxu0 %v1787
        %1944 = vmatprep.subr.bf16.mxu0 %v1786
        %1945 = vmatpush2.bf16.msra.mxu0 %v1785
        %1946 = vmatprep.subr.bf16.mxu0 %v1784
        %1947 = vmatpush2.bf16.msra.mxu0 %v1783
        %1948 = vmatprep.subr.bf16.mxu0 %v1782
        %1949 = vmatpush2.bf16.msra.mxu0 %v1781
        %1950 = vmatprep.subr.bf16.mxu0 %v1780
        %1951 = vmatpush2.bf16.msra.mxu0 %v1779
        %1952 = vmatprep.subr.bf16.mxu0 %v1778
        %1953 = vmatpush2.bf16.msra.mxu0 %v1777
        %1954 = vmatprep.subr.bf16.mxu0 %v1776
        %1955 = vmatpush2.bf16.msra.mxu0 %v1775
        %1956 = vmatprep.subr.bf16.mxu0 %v1774
        %1957 = vmatpush2.bf16.msra.mxu0 %v1773
        %1958 = vmatprep.mubr.bf16.mxu0 %v1456
        %1959 = vmatmul.mubr.bf16.gmra.mxu0 %v1455
        %v1960 = vpop.f32.mrf.mxu0
        %v1961 = vadd.f32 %v1888, %v1960
        %v1962 = vpop.f32.mrf.mxu0
        %v1963 = vadd.f32 %v1890, %v1962
        %v1964 = vpop.f32.mrf.mxu0
        %v1965 = vadd.f32 %v1892, %v1964
        %v1966 = vpop.f32.mrf.mxu0
        %v1967 = vadd.f32 %v1894, %v1966
        %1968 = vmatprep.mubr.bf16.mxu0 %v1460
        %1969 = vmatmul.mubr.bf16.gmra.mxu0 %v1459
        %v1970 = vpop.f32.mrf.mxu0
        %v1971 = vadd.f32 %v1898, %v1970
        %v1972 = vpop.f32.mrf.mxu0
        %v1973 = vadd.f32 %v1900, %v1972
        %v1974 = vpop.f32.mrf.mxu0
        %v1975 = vadd.f32 %v1902, %v1974
        %v1976 = vpop.f32.mrf.mxu0
        %v1977 = vadd.f32 %v1904, %v1976
        %1978 = vmatprep.mubr.bf16.mxu0 %v1464
        %1979 = vmatmul.mubr.bf16.gmra.mxu0 %v1463
        %v1980 = vpop.f32.mrf.mxu0
        %v1981 = vadd.f32 %v1908, %v1980
        %v1982 = vpop.f32.mrf.mxu0
        %v1983 = vadd.f32 %v1910, %v1982
        %v1984 = vpop.f32.mrf.mxu0
        %v1985 = vadd.f32 %v1912, %v1984
        %v1986 = vpop.f32.mrf.mxu0
        %v1987 = vadd.f32 %v1914, %v1986
        %1988 = vmatprep.mubr.bf16.mxu0 %v1468
        %1989 = vmatmul.mubr.bf16.gmra.mxu0 %v1467
        %v1990 = vpop.f32.mrf.mxu0
        %v1991 = vadd.f32 %v1918, %v1990
        %v1992 = vpop.f32.mrf.mxu0
        %v1993 = vadd.f32 %v1920, %v1992
        %v1994 = vpop.f32.mrf.mxu0
        %v1995 = vadd.f32 %v1922, %v1994
        %v1996 = vpop.f32.mrf.mxu0
        %v1997 = vadd.f32 %v1924, %v1996
        %1998 = vdwg.mxu0
        %v1999 = vadd.f32 %v1437, %v1961
        %v2000 = vadd.f32 %v1438, %v1963
        %v2001 = vadd.f32 %v1439, %v1965
        %v2002 = vadd.f32 %v1440, %v1967
        %v2003 = vadd.f32 %v1441, %v1971
        %v2004 = vadd.f32 %v1442, %v1973
        %v2005 = vadd.f32 %v1443, %v1975
        %v2006 = vadd.f32 %v1444, %v1977
        %v2007 = vadd.f32 %v1445, %v1981
        %v2008 = vadd.f32 %v1446, %v1983
        %v2009 = vadd.f32 %v1447, %v1985
        %v2010 = vadd.f32 %v1448, %v1987
        %v2011 = vadd.f32 %v1449, %v1991
        %v2012 = vadd.f32 %v1450, %v1993
        %v2013 = vadd.f32 %v1451, %v1995
        %v2014 = vadd.f32 %v1452, %v1997
        %2015 = vst [vmem:[#allocation3] sm:$0xff] %v1999
        %2016 = vst [vmem:[#allocation3 + $0x8] sm:$0xff] %v2000
        %2017 = vst [vmem:[#allocation3 + $0x10] sm:$0xff] %v2001
        %2018 = vst [vmem:[#allocation3 + $0x18] sm:$0xff] %v2002
        %2019 = vst [vmem:[#allocation3 + $0x20] sm:$0xff] %v2003
        %2020 = vst [vmem:[#allocation3 + $0x28] sm:$0xff] %v2004
        %2021 = vst [vmem:[#allocation3 + $0x30] sm:$0xff] %v2005
        %2022 = vst [vmem:[#allocation3 + $0x38] sm:$0xff] %v2006
        %2023 = vst [vmem:[#allocation3 + $0x40] sm:$0xff] %v2007
        %2024 = vst [vmem:[#allocation3 + $0x48] sm:$0xff] %v2008
        %2025 = vst [vmem:[#allocation3 + $0x50] sm:$0xff] %v2009
        %2026 = vst [vmem:[#allocation3 + $0x58] sm:$0xff] %v2010
        %2027 = vst [vmem:[#allocation3 + $0x60] sm:$0xff] %v2011
        %2028 = vst [vmem:[#allocation3 + $0x68] sm:$0xff] %v2012
        %2029 = vst [vmem:[#allocation3 + $0x70] sm:$0xff] %v2013
        %2030 = vst [vmem:[#allocation3 + $0x78] sm:$0xff] %v2014
        // Predicated region
        $region61: #{tpu_custom_call.1} parent=39 // pred_check
          %p2031 = pneg %p328
        $region62: #{tpu_custom_call.1} parent=39 // pred_check_branch
          %2033 = sbr.rel (%p2031) target = $region64
        $region63: #{tpu_custom_call.1} parent=39 // pred_region
          %v2034 = vld [vmem:[%s284] sm:$0xff]
          %v2035 = vld [vmem:[%s284 + $0x8] sm:$0xff]
          %v2036 = vld [vmem:[%s284 + $0x10] sm:$0xff]
          %v2037 = vld [vmem:[%s284 + $0x18] sm:$0xff]
          %v2038 = vld [vmem:[%s284 + $0x20] sm:$0xff]
          %v2039 = vld [vmem:[%s284 + $0x28] sm:$0xff]
          %v2040 = vld [vmem:[%s284 + $0x30] sm:$0xff]
          %v2041 = vld [vmem:[%s284 + $0x38] sm:$0xff]
          %v2042 = vld [vmem:[%s284 + $0x40] sm:$0xff]
          %v2043 = vld [vmem:[%s284 + $0x48] sm:$0xff]
          %v2044 = vld [vmem:[%s284 + $0x50] sm:$0xff]
          %v2045 = vld [vmem:[%s284 + $0x58] sm:$0xff]
          %v2046 = vld [vmem:[%s284 + $0x60] sm:$0xff]
          %v2047 = vld [vmem:[%s284 + $0x68] sm:$0xff]
          %v2048 = vld [vmem:[%s284 + $0x70] sm:$0xff]
          %v2049 = vld [vmem:[%s284 + $0x78] sm:$0xff]
          %v2050 = vld [vmem:[#allocation3] sm:$0xff]
          %v2051 = vld [vmem:[#allocation3 + $0x8] sm:$0xff]
          %v2052 = vld [vmem:[#allocation3 + $0x10] sm:$0xff]
          %v2053 = vld [vmem:[#allocation3 + $0x18] sm:$0xff]
          %v2054 = vld [vmem:[#allocation3 + $0x20] sm:$0xff]
          %v2055 = vld [vmem:[#allocation3 + $0x28] sm:$0xff]
          %v2056 = vld [vmem:[#allocation3 + $0x30] sm:$0xff]
          %v2057 = vld [vmem:[#allocation3 + $0x38] sm:$0xff]
          %v2058 = vld [vmem:[#allocation3 + $0x40] sm:$0xff]
          %v2059 = vld [vmem:[#allocation3 + $0x48] sm:$0xff]
          %v2060 = vld [vmem:[#allocation3 + $0x50] sm:$0xff]
          %v2061 = vld [vmem:[#allocation3 + $0x58] sm:$0xff]
          %v2062 = vld [vmem:[#allocation3 + $0x60] sm:$0xff]
          %v2063 = vld [vmem:[#allocation3 + $0x68] sm:$0xff]
          %v2064 = vld [vmem:[#allocation3 + $0x70] sm:$0xff]
          %v2065 = vld [vmem:[#allocation3 + $0x78] sm:$0xff]
          %v2066 = vadd.f32 %v2034, %v2050
          %v2067 = vadd.f32 %v2035, %v2051
          %v2068 = vadd.f32 %v2036, %v2052
          %v2069 = vadd.f32 %v2037, %v2053
          %v2070 = vadd.f32 %v2038, %v2054
          %v2071 = vadd.f32 %v2039, %v2055
          %v2072 = vadd.f32 %v2040, %v2056
          %v2073 = vadd.f32 %v2041, %v2057
          %v2074 = vadd.f32 %v2042, %v2058
          %v2075 = vadd.f32 %v2043, %v2059
          %v2076 = vadd.f32 %v2044, %v2060
          %v2077 = vadd.f32 %v2045, %v2061
          %v2078 = vadd.f32 %v2046, %v2062
          %v2079 = vadd.f32 %v2047, %v2063
          %v2080 = vadd.f32 %v2048, %v2064
          %v2081 = vadd.f32 %v2049, %v2065
          %v2082 = vld [vmem:[%s4] sm:$0x3]
          %v2084 = vlaneseq
          %v2085 = vshrl.u32 %v2084, 7
          %v2086 = vsub.s32 0, %v2085
          %v2087 = vrot.slane %v2082, %v2086
          %v2088 = vlaneseq
          %v2089 = vshrl.u32 %v2088, 7
          %v2090 = vsub.s32 1, %v2089
          %v2091 = vrot.slane %v2082, %v2090
          %v2094 = vadd.f32 %v2066, %v2087
          %v2095 = vadd.f32 %v2067, %v2091
          %v2096 = vadd.f32 %v2068, %v2087
          %v2097 = vadd.f32 %v2069, %v2091
          %v2098 = vadd.f32 %v2070, %v2087
          %v2099 = vadd.f32 %v2071, %v2091
          %v2100 = vadd.f32 %v2072, %v2087
          %v2101 = vadd.f32 %v2073, %v2091
          %v2102 = vadd.f32 %v2074, %v2087
          %v2103 = vadd.f32 %v2075, %v2091
          %v2104 = vadd.f32 %v2076, %v2087
          %v2105 = vadd.f32 %v2077, %v2091
          %v2106 = vadd.f32 %v2078, %v2087
          %v2107 = vadd.f32 %v2079, %v2091
          %v2108 = vadd.f32 %v2080, %v2087
          %v2109 = vadd.f32 %v2081, %v2091
          %2110 = vst [vmem:[%s322] sm:$0xff] %v2094
          %2111 = vst [vmem:[%s322 + $0x8] sm:$0xff] %v2095
          %2112 = vst [vmem:[%s322 + $0x10] sm:$0xff] %v2096
          %2113 = vst [vmem:[%s322 + $0x18] sm:$0xff] %v2097
          %2114 = vst [vmem:[%s322 + $0x20] sm:$0xff] %v2098
          %2115 = vst [vmem:[%s322 + $0x28] sm:$0xff] %v2099
          %2116 = vst [vmem:[%s322 + $0x30] sm:$0xff] %v2100
          %2117 = vst [vmem:[%s322 + $0x38] sm:$0xff] %v2101
          %2118 = vst [vmem:[%s322 + $0x40] sm:$0xff] %v2102
          %2119 = vst [vmem:[%s322 + $0x48] sm:$0xff] %v2103
          %2120 = vst [vmem:[%s322 + $0x50] sm:$0xff] %v2104
          %2121 = vst [vmem:[%s322 + $0x58] sm:$0xff] %v2105
          %2122 = vst [vmem:[%s322 + $0x60] sm:$0xff] %v2106
          %2123 = vst [vmem:[%s322 + $0x68] sm:$0xff] %v2107
          %2124 = vst [vmem:[%s322 + $0x70] sm:$0xff] %v2108
          %2125 = vst [vmem:[%s322 + $0x78] sm:$0xff] %v2109
        $region64: #{tpu_custom_call.1} parent=39 // pred_fallthru
          _
        %s2126 = sand.u32 %s169, 1
        %s2127 = scalar_lea.sflag [#allocation6], %s2126
        %s2128 = sand.u32 %s169, 1
        %s2129 = smul.addr %s2128, 128
        %s2130 = scalar_lea.vmem [#allocation12], %s2129
        // Predicated region
        $region65: #{tpu_custom_call.1} parent=39 // pred_check
          %p2131 = pneg %p179
        $region66: #{tpu_custom_call.1} parent=39 // pred_check_branch
          %2133 = sbr.rel (%p2131) target = $region68
        $region67: #{tpu_custom_call.1} parent=39 // pred_region
          %s2134 = smul.u32 8, %s28
          %s2136 = ssub.s32 2048, 2048
          %2137 = vsyncadd %s2127, %s2136
          %s2138 = smul.addr %s2134, 2
          %s2139 = smul.addr %s2138, 128
          %s2140 = scalar_lea.hbm %s5, %s2139
          %s2141 = sshll.u32 %s2130, 4
          %s2142 = int_to_ptr.vmem [resolvable:$true] %s2141
          %2147 = dma.vmem_to_hbm [thread:$0]  %s2142, 2048, %s2140, %s2127, 256, 256, 16
        $region68: #{tpu_custom_call.1} parent=39 // pred_fallthru
          _
      $region40: #{tpu_custom_call.1} parent=5 // pred_fallthru
        _
      %p2148 = scmp.le.s32.totalorder 2, %s19
      // Predicated region
      $region69: #{tpu_custom_call.1} parent=5 // pred_check
        %p2149 = pneg %p2148
      $region70: #{tpu_custom_call.1} parent=5 // pred_check_branch
        %2151 = sbr.rel (%p2149) target = $region72
      $region71: #{tpu_custom_call.1} parent=5 // pred_region
        %s2152 = ssub.s32 %s19, 2
        // Predicated region
        $region73: #{tpu_custom_call.1} parent=71 // pred_check
          %p2153 = pneg %p185
        $region74: #{tpu_custom_call.1} parent=71 // pred_check_branch
          %2155 = sbr.rel (%p2153) target = $region76
        $region75: #{tpu_custom_call.1} parent=71 // pred_region
          %s2156 = sand.u32 %s170, 1
          %s2157 = scalar_lea.sflag [#allocation6], %s2156
          %s2158 = sand.u32 %s170, 1
          %s2159 = smul.addr %s2158, 128
          %s2160 = scalar_lea.vmem [#allocation12], %s2159
          %2161 = dma.done %s2157, 2048
        $region76: #{tpu_custom_call.1} parent=71 // pred_fallthru
          _
      $region72: #{tpu_custom_call.1} parent=5 // pred_fallthru
        _
    $region6: #{tpu_custom_call.1} parent=1 // loop_footer
      %s23 = sadd.s32 1, %s19
    $region7: #{tpu_custom_call.1} parent=1 // loop_footer_branch
      %18 = sbr.rel target = $region3
    $region8: #{tpu_custom_call.1} parent=1 // loop_exit
      _
    %2162 = vsyncpa [#allocation5], 1
    %s2163 = scalar_lea.sflag [#allocation5], 1
    %2164 = vsyncpa %s2163, 1
    %2165 = vsyncpa [#allocation8], 1
    %2166 = vsyncpa [#allocation11], 1
    %2167 = vsyncpa [#allocation6], 1
    %s2168 = scalar_lea.sflag [#allocation6], 1
    %2169 = vsyncpa %s2168, 1

</llo_original>
